<compile_context>
chip_gen: v6e
topology: v6e:2x2x1
jax: 0.10.0
libtpu: 0.0.40
codegen_flags: <defaults>
</compile_context>

<pallas_src>
import functools
import math

import jax
import jax.numpy as jnp
from jax.experimental import pallas as pl
from jax.experimental.pallas import tpu as pltpu


def _round_up(x, m):
    return ((x + m - 1) // m) * m


def _largest_tile(dim, unit, cap):
    """Largest multiple of `unit` that divides `dim` and is <= cap."""
    n = dim // unit
    best = 1
    d = 1
    while d <= n and unit * d <= cap:
        if n % d == 0:
            best = d
        d += 1
    return unit * best


# ---------------- Pallas GEMM: bf16 x bf16 -> f32, K-tiled accumulator ----------------

def _gemm_kernel(a_ref, b_ref, bias_ref, o_ref, acc_ref, *, relu):
    k = pl.program_id(2)

    @pl.when(k == 0)
    def _():
        acc_ref[...] = jnp.zeros_like(acc_ref)

    acc_ref[...] += jnp.dot(a_ref[...], b_ref[...],
                            preferred_element_type=jnp.float32)

    @pl.when(k == pl.num_programs(2) - 1)
    def _():
        r = acc_ref[...] + bias_ref[...]
        if relu:
            r = jnp.maximum(r, 0.0)
        o_ref[...] = r.astype(o_ref.dtype)


def gemm_bias(a_bf16, b_bf16, bias_f32, *, relu, tm):
    """(Mp,Kp)bf16 @ (Kp,Np)bf16 + bias[Np], f32 accumulation, optional fused ReLU."""
    mp, kp = a_bf16.shape
    _, np_ = b_bf16.shape
    tn = _largest_tile(np_, 128, 256)
    tk = _largest_tile(kp, 128, 512)
    assert mp % tm == 0 and np_ % tn == 0 and kp % tk == 0
    return pl.pallas_call(
        functools.partial(_gemm_kernel, relu=relu),
        out_shape=jax.ShapeDtypeStruct((mp, np_), jnp.float32),
        grid=(mp // tm, np_ // tn, kp // tk),
        in_specs=[
            pl.BlockSpec((tm, tk), lambda i, j, k: (i, k)),
            pl.BlockSpec((tk, tn), lambda i, j, k: (k, j)),
            pl.BlockSpec((1, tn), lambda i, j, k: (0, j)),
        ],
        out_specs=pl.BlockSpec((tm, tn), lambda i, j, k: (i, j)),
        scratch_shapes=[pltpu.VMEM((tm, tn), jnp.float32)],
        compiler_params=pltpu.CompilerParams(
            dimension_semantics=("parallel", "parallel", "arbitrary")),
    )(a_bf16, b_bf16, bias_f32.reshape(1, np_))


# ---------------- per-channel sum / sum-of-squares (BN batch statistics) ----------------

def _stats_kernel(y_ref, sum_ref, ssq_ref, *, m_valid, tm):
    i = pl.program_id(0)

    @pl.when(i == 0)
    def _():
        sum_ref[...] = jnp.zeros_like(sum_ref)
        ssq_ref[...] = jnp.zeros_like(ssq_ref)

    y = y_ref[...]
    rows = jax.lax.broadcasted_iota(jnp.int32, y.shape, 0) + i * tm
    y = jnp.where(rows < m_valid, y, 0.0)          # mask out padded M rows
    sum_ref[...] += jnp.sum(y, axis=0, keepdims=True)
    ssq_ref[...] += jnp.sum(y * y, axis=0, keepdims=True)


def channel_stats(y, *, m_valid, tm):
    mp, np_ = y.shape
    assert mp % tm == 0
    return pl.pallas_call(
        functools.partial(_stats_kernel, m_valid=m_valid, tm=tm),
        out_shape=(jax.ShapeDtypeStruct((1, np_), jnp.float32),
                   jax.ShapeDtypeStruct((1, np_), jnp.float32)),
        grid=(mp // tm,),
        in_specs=[pl.BlockSpec((tm, np_), lambda i: (i, 0))],
        out_specs=(pl.BlockSpec((1, np_), lambda i: (0, 0)),
                   pl.BlockSpec((1, np_), lambda i: (0, 0))),
        compiler_params=pltpu.CompilerParams(
            dimension_semantics=("arbitrary",)),
    )(y)


# ---------------- fused BN-affine + ReLU (+ 2x2 max-pool) ----------------

def _affine_relu_kernel(y_ref, scale_ref, shift_ref, o_ref):
    o_ref[...] = jnp.maximum(y_ref[...] * scale_ref[...] + shift_ref[...], 0.0)


def affine_relu(y, scale, shift, *, tm):
    mp, np_ = y.shape
    return pl.pallas_call(
        _affine_relu_kernel,
        out_shape=jax.ShapeDtypeStruct((mp, np_), jnp.float32),
        grid=(mp // tm,),
        in_specs=[pl.BlockSpec((tm, np_), lambda i: (i, 0)),
                  pl.BlockSpec((1, np_), lambda i: (0, 0)),
                  pl.BlockSpec((1, np_), lambda i: (0, 0))],
        out_specs=pl.BlockSpec((tm, np_), lambda i: (i, 0)),
        compiler_params=pltpu.CompilerParams(
            dimension_semantics=("parallel",)),
    )(y, scale, shift)


def _affine_relu_pool_kernel(y_ref, scale_ref, shift_ref, o_ref, *, wo):
    # Block rows (w-parity-split order):
    #   [0:w2)      -> h even, w even     [w2:2w2)   -> h even, w odd
    #   [2w2:3w2)   -> h odd,  w even     [3w2:4w2)  -> h odd,  w odd
    sc = scale_ref[...]
    sh = shift_ref[...]
    w2 = wo // 2

    def f(v):
        return jnp.maximum(v * sc + sh, 0.0)

    p0 = f(y_ref[pl.ds(0 * w2, w2), :])
    p1 = f(y_ref[pl.ds(1 * w2, w2), :])
    p2 = f(y_ref[pl.ds(2 * w2, w2), :])
    p3 = f(y_ref[pl.ds(3 * w2, w2), :])
    o_ref[...] = jnp.maximum(jnp.maximum(p0, p1), jnp.maximum(p2, p3))


def affine_relu_pool(y, scale, shift, *, nb, ho, wo, np_):
    ho2, wo2 = ho // 2, wo // 2
    return pl.pallas_call(
        functools.partial(_affine_relu_pool_kernel, wo=wo),
        out_shape=jax.ShapeDtypeStruct((nb * ho2 * wo2, np_), jnp.float32),
        grid=(nb, ho2),
        in_specs=[
            pl.BlockSpec((2 * wo, np_), lambda n, h: (n * ho2 + h, 0)),
            pl.BlockSpec((1, np_), lambda n, h: (0, 0)),
            pl.BlockSpec((1, np_), lambda n, h: (0, 0)),
        ],
        out_specs=pl.BlockSpec((wo2, np_), lambda n, h: (n * ho2 + h, 0)),
        compiler_params=pltpu.CompilerParams(
            dimension_semantics=("parallel", "parallel")),
    )(y, scale, shift)


# ---------------- JAX glue: bf16 NHWC im2col (optionally w-parity-split row order) ----------------

def _im2col_nhwc(x_nhwc_bf16, k, stride, pad, *, w_split):
    nb, h, w, c = x_nhwc_bf16.shape
    xp = jnp.pad(x_nhwc_bf16, ((0, 0), (pad, pad), (pad, pad), (0, 0)))
    ho = (h + 2 * pad - k) // stride + 1
    wo = (w + 2 * pad - k) // stride + 1
    cols = []
    for kh in range(k):
        for kw in range(k):
            cols.append(xp[:, kh:kh + stride * (ho - 1) + 1:stride,
                              kw:kw + stride * (wo - 1) + 1:stride, :])
    patches = jnp.stack(cols, axis=3)                      # (nb, ho, wo, k*k, c)
    if w_split:
        # Row order (n, h, w%2, w//2): the four 2x2-pool phases become contiguous slices.
        patches = patches.reshape(nb, ho, wo // 2, 2, k * k, c)
        patches = patches.transpose(0, 1, 3, 2, 4, 5)      # (nb, ho, 2, wo//2, k*k, c)
    a = patches.reshape(nb * ho * wo, k * k * c)
    return a, ho, wo


# ---------------- EncoderBlock forward ----------------

def encoder_block_forward(params, x_nchw, *, is_norm=True, is_pooling=True, eps=1e-5):
    w, b = params['w'], params['b']
    cout, cin, k, _ = w.shape
    nb = x_nchw.shape[0]

    x = jnp.transpose(x_nchw, (0, 2, 3, 1))                # NCHW -> NHWC once at entry
    a, ho, wo = _im2col_nhwc(x.astype(jnp.bfloat16), k, 2, 2, w_split=is_pooling)
    if is_pooling:
        assert ho % 2 == 0 and wo % 16 == 0, \
            "fused pool kernel tiling requires even Ho and Wo a multiple of 16"
    m, kk = a.shape

    np_ = _round_up(cout, 128)                             # lane-dense output channels
    kp = _round_up(kk, 128)
    tm = min(512, _round_up(m, 8))
    mp = _round_up(m, tm)

    a = jnp.pad(a, ((0, mp - m), (0, kp - kk)))
    bmat = jnp.pad(w.transpose(2, 3, 1, 0).reshape(kk, cout).astype(jnp.bfloat16),
                   ((0, kp - kk), (0, np_ - cout)))
    bias = jnp.pad(b.astype(jnp.float32), (0, np_ - cout))

    # ReLU is fused into the GEMM finalize when there is no BatchNorm in between.
    y = gemm_bias(a, bmat, bias, relu=(not is_norm), tm=tm)     # (mp, np_) f32

    if is_norm:
        # TODO(synk): training-mode batch statistics (biased var), matching a freshly
        # constructed nn.BatchNorm2d in train(); eval() running stats are not modeled.
        sums, ssqs = channel_stats(y, m_valid=m, tm=tm)
        mean = sums / m
        var = jnp.maximum(ssqs / m - mean * mean, 0.0)
        gamma = jnp.pad(params['gamma'].astype(jnp.float32), (0, np_ - cout)).reshape(1, np_)
        beta = jnp.pad(params['beta'].astype(jnp.float32), (0, np_ - cout)).reshape(1, np_)
        scale = gamma * jax.lax.rsqrt(var + eps)
        shift = beta - mean * scale
    else:
        scale = jnp.ones((1, np_), jnp.float32)
        shift = jnp.zeros((1, np_), jnp.float32)

    if is_pooling:
        out = affine_relu_pool(y, scale, shift, nb=nb, ho=ho, wo=wo, np_=np_)
        oh, ow = ho // 2, wo // 2
    else:
        if is_norm:
            y = affine_relu(y, scale, shift, tm=tm)
        out = y[:m]
        oh, ow = ho, wo

    out = out.reshape(nb, oh, ow, np_)[..., :cout]
    return jnp.transpose(out, (0, 3, 1, 2))                # NHWC -> NCHW once at exit


# ---------------- deterministic parameter init ----------------

def init_params(key, cin, cout, k=5):
    w = jax.random.normal(key, (cout, cin, k, k), jnp.float32) / math.sqrt(cin * k * k)
    return {
        'w': w,
        'b': jnp.zeros((cout,), jnp.float32),
        'gamma': jnp.ones((cout,), jnp.float32),
        'beta': jnp.zeros((cout,), jnp.float32),
    }


if __name__ == "__main__":
    key = jax.random.PRNGKey(0)
    pkey, xkey = jax.random.split(key)
    cin, cout = 4, 64
    params = init_params(pkey, cin, cout)
    x = jax.random.normal(xkey, (2, cin, 32, 32), jnp.float32)

    # EncoderBlock(cin, cout, is_norm=True, is_pooling=True)
    fwd_full = jax.jit(functools.partial(encoder_block_forward,
                                         is_norm=True, is_pooling=True))
    out = jax.block_until_ready(fwd_full(params, x))
    assert out.shape == (2, cout, 8, 8), out.shape
    assert bool(jnp.all(jnp.isfinite(out)))

    # EncoderBlock(cin, cout, is_norm=True, is_pooling=False)
    fwd_nopool = jax.jit(functools.partial(encoder_block_forward,
                                           is_norm=True, is_pooling=False))
    out2 = jax.block_until_ready(fwd_nopool(params, x))
    assert out2.shape == (2, cout, 16, 16), out2.shape
    assert bool(jnp.all(jnp.isfinite(out2)))

    # EncoderBlock(cin, cout, is_norm=False, is_pooling=False)  (conv + fused ReLU only)
    fwd_plain = jax.jit(functools.partial(encoder_block_forward,
                                          is_norm=False, is_pooling=False))
    out3 = jax.block_until_ready(fwd_plain(params, x))
    assert out3.shape == (2, cout, 16, 16), out3.shape
    assert bool(jnp.all(jnp.isfinite(out3)))

    print("KERNEL_OK")
</pallas_src>

<mosaic_0001>
module attributes {stable_mosaic.version = 11 : i64} {
  func.func @_gemm_kernel(%arg0: i32, %arg1: i32, %arg2: i32, %arg3: memref<512x128xbf16, #tpu.memory_space<vmem>>, %arg4: memref<128x128xbf16, #tpu.memory_space<vmem>>, %arg5: memref<1x128xf32, #tpu.memory_space<vmem>>, %arg6: memref<512x128xf32, #tpu.memory_space<vmem>>, %arg7: memref<512x128xf32, #tpu.memory_space<vmem>>) attributes {dimension_semantics = [#tpu.dimension_semantics<parallel>, #tpu.dimension_semantics<parallel>, #tpu.dimension_semantics<arbitrary>], iteration_bounds = array<i64: 1, 1, 1>, scalar_prefetch = 0 : i64, scratch_operands = 1 : i64, tpu.core_type = #tpu.core_type<tc>, window_params = [{transform_indices = @transform_0, window_bounds = array<i64: 512, 128>}, {transform_indices = @transform_1, window_bounds = array<i64: 128, 128>}, {transform_indices = @transform_2, window_bounds = array<i64: 1, 128>}, {transform_indices = @transform_3, window_bounds = array<i64: 512, 128>}]} {
    %c0_i32 = arith.constant 0 : i32
    %0 = arith.cmpi eq, %arg2, %c0_i32 : i32
    %1 = arith.extui %0 : i1 to i32
    %c0_i32_0 = arith.constant 0 : i32
    %2 = arith.cmpi ne, %1, %c0_i32_0 : i32
    scf.if %2 {
      %cst_10 = arith.constant 0.000000e+00 : f32
      %12 = vector.broadcast %cst_10 : f32 to vector<512x128xf32>
      %c0_11 = arith.constant 0 : index
      %c0_12 = arith.constant 0 : index
      %13 = vector.load %arg7[%c0_11, %c0_12] : memref<512x128xf32, #tpu.memory_space<vmem>>, vector<512x128xf32>
      tpu.vector_store %arg7[%c0_11, %c0_12], %12 {strides = array<i32>} : memref<512x128xf32, #tpu.memory_space<vmem>>, vector<512x128xf32>,
    } else {
    }
    %c0 = arith.constant 0 : index
    %c0_1 = arith.constant 0 : index
    %3 = vector.load %arg7[%c0, %c0_1] : memref<512x128xf32, #tpu.memory_space<vmem>>, vector<512x128xf32>
    %c0_2 = arith.constant 0 : index
    %c0_3 = arith.constant 0 : index
    %4 = vector.load %arg3[%c0_2, %c0_3] : memref<512x128xbf16, #tpu.memory_space<vmem>>, vector<512x128xbf16>
    %c0_4 = arith.constant 0 : index
    %c0_5 = arith.constant 0 : index
    %5 = vector.load %arg4[%c0_4, %c0_5] : memref<128x128xbf16, #tpu.memory_space<vmem>>, vector<128x128xbf16>
    %cst = arith.constant dense<0.000000e+00> : vector<512x128xf32>
    %6 = tpu.matmul %4, %5, %cst {dimension_numbers = #tpu.dot_dimension_numbers<[1], [0], [0], [1], [0, 0, 1, 1], [], []>} : vector<512x128xbf16>, vector<128x128xbf16>, vector<512x128xf32> -> vector<512x128xf32>
    %7 = arith.addf %3, %6 : vector<512x128xf32>
    %c0_6 = arith.constant 0 : index
    %c0_7 = arith.constant 0 : index
    %8 = vector.load %arg7[%c0_6, %c0_7] : memref<512x128xf32, #tpu.memory_space<vmem>>, vector<512x128xf32>
    tpu.vector_store %arg7[%c0_6, %c0_7], %7 {strides = array<i32>} : memref<512x128xf32, #tpu.memory_space<vmem>>, vector<512x128xf32>,
    %c0_i32_8 = arith.constant 0 : i32
    %9 = arith.cmpi eq, %arg2, %c0_i32_8 : i32
    %10 = arith.extui %9 : i1 to i32
    %c0_i32_9 = arith.constant 0 : i32
    %11 = arith.cmpi ne, %10, %c0_i32_9 : i32
    scf.if %11 {
      %c0_10 = arith.constant 0 : index
      %c0_11 = arith.constant 0 : index
      %12 = vector.load %arg7[%c0_10, %c0_11] : memref<512x128xf32, #tpu.memory_space<vmem>>, vector<512x128xf32>
      %c0_12 = arith.constant 0 : index
      %c0_13 = arith.constant 0 : index
      %13 = vector.load %arg5[%c0_12, %c0_13] : memref<1x128xf32, #tpu.memory_space<vmem>>, vector<1x128xf32>
      %14 = vector.broadcast %13 : vector<1x128xf32> to vector<512x128xf32>
      %15 = arith.addf %12, %14 : vector<512x128xf32>
      %c0_14 = arith.constant 0 : index
      %c0_15 = arith.constant 0 : index
      %16 = vector.load %arg6[%c0_14, %c0_15] : memref<512x128xf32, #tpu.memory_space<vmem>>, vector<512x128xf32>
      tpu.vector_store %arg6[%c0_14, %c0_15], %15 {strides = array<i32>} : memref<512x128xf32, #tpu.memory_space<vmem>>, vector<512x128xf32>,
    } else {
    }
    return
  }
  func.func @transform_0(%arg0: i32, %arg1: i32, %arg2: i32) -> (i32, i32) {
    %c0_i32 = arith.constant 0 : i32
    return %arg0, %arg2 : i32, i32
  }
  func.func @transform_1(%arg0: i32, %arg1: i32, %arg2: i32) -> (i32, i32) {
    %c0_i32 = arith.constant 0 : i32
    return %arg2, %arg1 : i32, i32
  }
  func.func @transform_2(%arg0: i32, %arg1: i32, %arg2: i32) -> (i32, i32) {
    %c0_i32 = arith.constant 0 : i32
    %c0_i32_0 = arith.constant 0 : i32
    return %c0_i32, %arg1 : i32, i32
  }
  func.func @transform_3(%arg0: i32, %arg1: i32, %arg2: i32) -> (i32, i32) {
    %c0_i32 = arith.constant 0 : i32
    return %arg0, %arg1 : i32, i32
  }
}

module attributes {stable_mosaic.version = 11 : i64} {
  func.func @_stats_kernel(%arg0: i32, %arg1: memref<512x128xf32, #tpu.memory_space<vmem>>, %arg2: memref<1x128xf32, #tpu.memory_space<vmem>>, %arg3: memref<1x128xf32, #tpu.memory_space<vmem>>) attributes {dimension_semantics = [#tpu.dimension_semantics<arbitrary>], iteration_bounds = array<i64: 1>, scalar_prefetch = 0 : i64, scratch_operands = 0 : i64, tpu.core_type = #tpu.core_type<tc>, window_params = [{transform_indices = @transform_0, window_bounds = array<i64: 512, 128>}, {pipeline_mode = #tpu.pipeline_mode<synchronous>, transform_indices = @transform_1, window_bounds = array<i64: 1, 128>}, {pipeline_mode = #tpu.pipeline_mode<synchronous>, transform_indices = @transform_2, window_bounds = array<i64: 1, 128>}]} {
    %c0_i32 = arith.constant 0 : i32
    %0 = arith.cmpi eq, %arg0, %c0_i32 : i32
    %1 = arith.extui %0 : i1 to i32
    %c0_i32_0 = arith.constant 0 : i32
    %2 = arith.cmpi ne, %1, %c0_i32_0 : i32
    scf.if %2 {
      %cst_13 = arith.constant 0.000000e+00 : f32
      %23 = vector.broadcast %cst_13 : f32 to vector<1x128xf32>
      %c0_14 = arith.constant 0 : index
      %c0_15 = arith.constant 0 : index
      %24 = vector.load %arg2[%c0_14, %c0_15] : memref<1x128xf32, #tpu.memory_space<vmem>>, vector<1x128xf32>
      tpu.vector_store %arg2[%c0_14, %c0_15], %23 {strides = array<i32>} : memref<1x128xf32, #tpu.memory_space<vmem>>, vector<1x128xf32>,
      %cst_16 = arith.constant 0.000000e+00 : f32
      %25 = vector.broadcast %cst_16 : f32 to vector<1x128xf32>
      %c0_17 = arith.constant 0 : index
      %c0_18 = arith.constant 0 : index
      %26 = vector.load %arg3[%c0_17, %c0_18] : memref<1x128xf32, #tpu.memory_space<vmem>>, vector<1x128xf32>
      tpu.vector_store %arg3[%c0_17, %c0_18], %25 {strides = array<i32>} : memref<1x128xf32, #tpu.memory_space<vmem>>, vector<1x128xf32>,
    } else {
    }
    %c0 = arith.constant 0 : index
    %c0_1 = arith.constant 0 : index
    %3 = vector.load %arg1[%c0, %c0_1] : memref<512x128xf32, #tpu.memory_space<vmem>>, vector<512x128xf32>
    %4 = tpu.iota {dimensions = array<i32: 0>} : vector<512x128xi32>
    %c512_i32 = arith.constant 512 : i32
    %5 = arith.muli %arg0, %c512_i32 : i32
    %6 = vector.broadcast %5 : i32 to vector<512x128xi32>
    %7 = arith.addi %4, %6 : vector<512x128xi32>
    %c512_i32_2 = arith.constant 512 : i32
    %8 = vector.broadcast %c512_i32_2 : i32 to vector<512x128xi32>
    %9 = arith.cmpi slt, %7, %8 : vector<512x128xi32>
    %cst = arith.constant 0.000000e+00 : f32
    %10 = vector.broadcast %cst : f32 to vector<512x128xf32>
    %11 = arith.select %9, %3, %10 : vector<512x128xi1>, vector<512x128xf32>
    %c0_3 = arith.constant 0 : index
    %c0_4 = arith.constant 0 : index
    %12 = vector.load %arg2[%c0_3, %c0_4] : memref<1x128xf32, #tpu.memory_space<vmem>>, vector<1x128xf32>
    %cst_5 = arith.constant dense<0.000000e+00> : vector<128xf32>
    %13 = vector.multi_reduction <add>, %11, %cst_5 [0] : vector<512x128xf32> to vector<128xf32>
    %14 = vector.shape_cast %13 : vector<128xf32> to vector<1x128xf32>
    %15 = arith.addf %12, %14 : vector<1x128xf32>
    %c0_6 = arith.constant 0 : index
    %c0_7 = arith.constant 0 : index
    %16 = vector.load %arg2[%c0_6, %c0_7] : memref<1x128xf32, #tpu.memory_space<vmem>>, vector<1x128xf32>
    tpu.vector_store %arg2[%c0_6, %c0_7], %15 {strides = array<i32>} : memref<1x128xf32, #tpu.memory_space<vmem>>, vector<1x128xf32>,
    %c0_8 = arith.constant 0 : index
    %c0_9 = arith.constant 0 : index
    %17 = vector.load %arg3[%c0_8, %c0_9] : memref<1x128xf32, #tpu.memory_space<vmem>>, vector<1x128xf32>
    %18 = arith.mulf %11, %11 : vector<512x128xf32>
    %cst_10 = arith.constant dense<0.000000e+00> : vector<128xf32>
    %19 = vector.multi_reduction <add>, %18, %cst_10 [0] : vector<512x128xf32> to vector<128xf32>
    %20 = vector.shape_cast %19 : vector<128xf32> to vector<1x128xf32>
    %21 = arith.addf %17, %20 : vector<1x128xf32>
    %c0_11 = arith.constant 0 : index
    %c0_12 = arith.constant 0 : index
    %22 = vector.load %arg3[%c0_11, %c0_12] : memref<1x128xf32, #tpu.memory_space<vmem>>, vector<1x128xf32>
    tpu.vector_store %arg3[%c0_11, %c0_12], %21 {strides = array<i32>} : memref<1x128xf32, #tpu.memory_space<vmem>>, vector<1x128xf32>,
    return
  }
  func.func @transform_0(%arg0: i32) -> (i32, i32) {
    %c0_i32 = arith.constant 0 : i32
    %c0_i32_0 = arith.constant 0 : i32
    return %arg0, %c0_i32 : i32, i32
  }
  func.func @transform_1(%arg0: i32) -> (i32, i32) {
    %c0_i32 = arith.constant 0 : i32
    %c0_i32_0 = arith.constant 0 : i32
    %c0_i32_1 = arith.constant 0 : i32
    return %c0_i32, %c0_i32_0 : i32, i32
  }
  func.func @transform_2(%arg0: i32) -> (i32, i32) {
    %c0_i32 = arith.constant 0 : i32
    %c0_i32_0 = arith.constant 0 : i32
    %c0_i32_1 = arith.constant 0 : i32
    return %c0_i32, %c0_i32_0 : i32, i32
  }
}

module attributes {stable_mosaic.version = 11 : i64} {
  func.func @_affine_relu_pool_kernel(%arg0: i32, %arg1: i32, %arg2: memref<32x128xf32, #tpu.memory_space<vmem>>, %arg3: memref<1x128xf32, #tpu.memory_space<vmem>>, %arg4: memref<1x128xf32, #tpu.memory_space<vmem>>, %arg5: memref<8x128xf32, #tpu.memory_space<vmem>>) attributes {dimension_semantics = [#tpu.dimension_semantics<parallel>, #tpu.dimension_semantics<parallel>], iteration_bounds = array<i64: 2, 8>, scalar_prefetch = 0 : i64, scratch_operands = 0 : i64, tpu.core_type = #tpu.core_type<tc>, window_params = [{transform_indices = @transform_0, window_bounds = array<i64: 32, 128>}, {pipeline_mode = #tpu.pipeline_mode<synchronous>, transform_indices = @transform_1, window_bounds = array<i64: 1, 128>}, {pipeline_mode = #tpu.pipeline_mode<synchronous>, transform_indices = @transform_2, window_bounds = array<i64: 1, 128>}, {transform_indices = @transform_3, window_bounds = array<i64: 8, 128>}]} {
    %c0 = arith.constant 0 : index
    %c0_0 = arith.constant 0 : index
    %0 = vector.load %arg3[%c0, %c0_0] : memref<1x128xf32, #tpu.memory_space<vmem>>, vector<1x128xf32>
    %c0_1 = arith.constant 0 : index
    %c0_2 = arith.constant 0 : index
    %1 = vector.load %arg4[%c0_1, %c0_2] : memref<1x128xf32, #tpu.memory_space<vmem>>, vector<1x128xf32>
    %c0_3 = arith.constant 0 : index
    %c0_4 = arith.constant 0 : index
    %2 = vector.load %arg2[%c0_3, %c0_4] : memref<32x128xf32, #tpu.memory_space<vmem>>, vector<8x128xf32>
    %3 = vector.broadcast %0 : vector<1x128xf32> to vector<8x128xf32>
    %4 = arith.mulf %2, %3 : vector<8x128xf32>
    %5 = vector.broadcast %1 : vector<1x128xf32> to vector<8x128xf32>
    %6 = arith.addf %4, %5 : vector<8x128xf32>
    %cst = arith.constant 0.000000e+00 : f32
    %7 = vector.broadcast %cst : f32 to vector<8x128xf32>
    %8 = arith.maximumf %6, %7 : vector<8x128xf32>
    %c8 = arith.constant 8 : index
    %c0_5 = arith.constant 0 : index
    %9 = vector.load %arg2[%c8, %c0_5] : memref<32x128xf32, #tpu.memory_space<vmem>>, vector<8x128xf32>
    %10 = vector.broadcast %0 : vector<1x128xf32> to vector<8x128xf32>
    %11 = arith.mulf %9, %10 : vector<8x128xf32>
    %12 = vector.broadcast %1 : vector<1x128xf32> to vector<8x128xf32>
    %13 = arith.addf %11, %12 : vector<8x128xf32>
    %cst_6 = arith.constant 0.000000e+00 : f32
    %14 = vector.broadcast %cst_6 : f32 to vector<8x128xf32>
    %15 = arith.maximumf %13, %14 : vector<8x128xf32>
    %c16 = arith.constant 16 : index
    %c0_7 = arith.constant 0 : index
    %16 = vector.load %arg2[%c16, %c0_7] : memref<32x128xf32, #tpu.memory_space<vmem>>, vector<8x128xf32>
    %17 = vector.broadcast %0 : vector<1x128xf32> to vector<8x128xf32>
    %18 = arith.mulf %16, %17 : vector<8x128xf32>
    %19 = vector.broadcast %1 : vector<1x128xf32> to vector<8x128xf32>
    %20 = arith.addf %18, %19 : vector<8x128xf32>
    %cst_8 = arith.constant 0.000000e+00 : f32
    %21 = vector.broadcast %cst_8 : f32 to vector<8x128xf32>
    %22 = arith.maximumf %20, %21 : vector<8x128xf32>
    %c24 = arith.constant 24 : index
    %c0_9 = arith.constant 0 : index
    %23 = vector.load %arg2[%c24, %c0_9] : memref<32x128xf32, #tpu.memory_space<vmem>>, vector<8x128xf32>
    %24 = vector.broadcast %0 : vector<1x128xf32> to vector<8x128xf32>
    %25 = arith.mulf %23, %24 : vector<8x128xf32>
    %26 = vector.broadcast %1 : vector<1x128xf32> to vector<8x128xf32>
    %27 = arith.addf %25, %26 : vector<8x128xf32>
    %cst_10 = arith.constant 0.000000e+00 : f32
    %28 = vector.broadcast %cst_10 : f32 to vector<8x128xf32>
    %29 = arith.maximumf %27, %28 : vector<8x128xf32>
    %30 = arith.maximumf %8, %15 : vector<8x128xf32>
    %31 = arith.maximumf %22, %29 : vector<8x128xf32>
    %32 = arith.maximumf %30, %31 : vector<8x128xf32>
    %c0_11 = arith.constant 0 : index
    %c0_12 = arith.constant 0 : index
    %33 = vector.load %arg5[%c0_11, %c0_12] : memref<8x128xf32, #tpu.memory_space<vmem>>, vector<8x128xf32>
    tpu.vector_store %arg5[%c0_11, %c0_12], %32 {strides = array<i32>} : memref<8x128xf32, #tpu.memory_space<vmem>>, vector<8x128xf32>,
    return
  }
  func.func @transform_0(%arg0: i32, %arg1: i32) -> (i32, i32) {
    %c8_i32 = arith.constant 8 : i32
    %0 = arith.muli %arg0, %c8_i32 : i32
    %1 = arith.addi %0, %arg1 : i32
    %c0_i32 = arith.constant 0 : i32
    %c0_i32_0 = arith.constant 0 : i32
    return %1, %c0_i32 : i32, i32
  }
  func.func @transform_1(%arg0: i32, %arg1: i32) -> (i32, i32) {
    %c0_i32 = arith.constant 0 : i32
    %c0_i32_0 = arith.constant 0 : i32
    %c0_i32_1 = arith.constant 0 : i32
    return %c0_i32, %c0_i32_0 : i32, i32
  }
  func.func @transform_2(%arg0: i32, %arg1: i32) -> (i32, i32) {
    %c0_i32 = arith.constant 0 : i32
    %c0_i32_0 = arith.constant 0 : i32
    %c0_i32_1 = arith.constant 0 : i32
    return %c0_i32, %c0_i32_0 : i32, i32
  }
  func.func @transform_3(%arg0: i32, %arg1: i32) -> (i32, i32) {
    %c8_i32 = arith.constant 8 : i32
    %0 = arith.muli %arg0, %c8_i32 : i32
    %1 = arith.addi %0, %arg1 : i32
    %c0_i32 = arith.constant 0 : i32
    %c0_i32_0 = arith.constant 0 : i32
    return %1, %c0_i32 : i32, i32
  }
}

</mosaic_0001>

<llo_original>
// kernel: encoder_block_forward.5
$region0: #{encoder_block_forward.5}
  #allocation0 [shape = 'u32[]', space=smem, size = 0x4, offset = 0x4, fixed_abs, tag = 'smem constant byte address 0x4 - core index']
  #allocation1 [shape = 'u32[144,128]{1,0:T(1,128)}', space=vmem, size = 0x12000, scoped, tag = 'internal scratch']
  %s0 = inlined_call_operand.vmem [shape: f32[512,128], index: 0, kind: input, shape index: {}]
  %s1 = inlined_call_operand.vmem [shape: f32[1,128], index: 1, kind: input, shape index: {}]
  %s2 = inlined_call_operand.vmem [shape: f32[1,128], index: 2, kind: input, shape index: {}]
  %s3 = inlined_call_operand.vmem [shape: f32[128,128], index: 3, kind: output, shape index: {}]
  %s4 = sld [smem:[#allocation0]]
  $region45: #{encoder_block_forward.5} parent=0
    _
  %s6 = ssub.s32 1, %s4
  %s7 = scalar_select 0, %s6, %s4
  loop: start=0, step=1, limit=18
  $region2: #{encoder_block_forward.5} parent=0 // loop_pre_header
    _
  $region3: #{encoder_block_forward.5} parent=0 // loop_header
    %s9 = sphi 0, %s13
    %p10 = scmp.ge.s32.totalorder %s9, 18
    %s16 = sphi 0, %s28
    %s17 = sphi 0, %s24
    %s18 = sphi 0, %s16
    %s19 = sphi 0, %s17
    %s20 = sphi 0, %s18
    %s21 = sphi 0, %s19
    %s35 = sphi 0, %s37
    %s38 = sphi 0, %s35
    %s39 = sphi 0, %s38
    %s55 = sphi 0, %s39
    %s59 = sphi 0, %s59
    %s61 = sphi 0, %s59
    %s62 = sphi 0, %s61
    %s76 = sphi 0, %s62
    %s80 = sphi 0, %s80
    %s82 = sphi 0, %s80
    %s83 = sphi 0, %s82
    %s97 = sphi 0, %s83
    %s107 = sphi 0, %s109
    %s110 = sphi 0, %s107
    %s111 = sphi 0, %s110
    %s127 = sphi 0, %s111
  $region4: #{encoder_block_forward.5} parent=0 // loop_header_branch
    %12 = sbr.rel (%p10) target = $region8
  $region5: #{encoder_block_forward.5} parent=0 // loop_body
    %s14 = ssub.s32 %s9, 1
    %s15 = ssub.s32 %s9, 2
    %s22 = sadd.s32 1, %s17
    %p23 = scmp.ge.s32.totalorder %s22, 8
    %s24 = scalar_select %p23, 0, %s22
    %s25 = sadd.s32 1, %s16
    %s26 = scalar_select %p23, %s25, %s16
    %p27 = scmp.ge.s32.totalorder %s26, 2
    %s28 = scalar_select %p27, 0, %s26
    %s29 = smul.u32 %s16, 8
    %s30 = sadd.s32 %s29, %s17
    %s31 = smul.u32 %s28, 8
    %s32 = sadd.s32 %s31, %s24
    %s33 = ssub.s32 %s30, %s32
    %p34 = scmp.eq.s32.totalorder %s33, 0
    %s36 = sadd.s32 %s35, 1
    %s37 = scalar_select %p34, %s35, %s36
    %p40 = pneg %p34
    %p41 = scmp.eq.s32.totalorder %s9, 15
    %p42 = por %p40, %p41
    %p43 = scmp.ne.s32.totalorder %s35, %s38
    %p44 = scmp.eq.s32.totalorder %s9, 0
    %p45 = por %p43, %p44
    %p46 = scmp.ne.s32.totalorder %s35, %s38
    %p47 = scmp.eq.s32.totalorder %s14, 15
    %p48 = por %p46, %p47
    %p49 = scmp.ne.s32.totalorder %s38, %s39
    %p50 = scmp.eq.s32.totalorder %s14, 0
    %p51 = por %p49, %p50
    %p52 = scmp.ne.s32.totalorder %s38, %s39
    %p53 = scmp.eq.s32.totalorder %s15, 15
    %p54 = por %p52, %p53
    %p56 = scmp.ne.s32.totalorder %s39, %s55
    %p57 = scmp.eq.s32.totalorder %s15, 0
    %p58 = por %p56, %p57
    %s60 = sadd.s32 %s59, 1
    %p63 = scmp.eq.s32.totalorder %s9, 15
    %p64 = scmp.ne.s32.totalorder %s59, %s61
    %p65 = scmp.eq.s32.totalorder %s9, 0
    %p66 = por %p64, %p65
    %p67 = scmp.ne.s32.totalorder %s59, %s61
    %p68 = scmp.eq.s32.totalorder %s14, 15
    %p69 = por %p67, %p68
    %p70 = scmp.ne.s32.totalorder %s61, %s62
    %p71 = scmp.eq.s32.totalorder %s14, 0
    %p72 = por %p70, %p71
    %p73 = scmp.ne.s32.totalorder %s61, %s62
    %p74 = scmp.eq.s32.totalorder %s15, 15
    %p75 = por %p73, %p74
    %p77 = scmp.ne.s32.totalorder %s62, %s76
    %p78 = scmp.eq.s32.totalorder %s15, 0
    %p79 = por %p77, %p78
    %s81 = sadd.s32 %s80, 1
    %p84 = scmp.eq.s32.totalorder %s9, 15
    %p85 = scmp.ne.s32.totalorder %s80, %s82
    %p86 = scmp.eq.s32.totalorder %s9, 0
    %p87 = por %p85, %p86
    %p88 = scmp.ne.s32.totalorder %s80, %s82
    %p89 = scmp.eq.s32.totalorder %s14, 15
    %p90 = por %p88, %p89
    %p91 = scmp.ne.s32.totalorder %s82, %s83
    %p92 = scmp.eq.s32.totalorder %s14, 0
    %p93 = por %p91, %p92
    %p94 = scmp.ne.s32.totalorder %s82, %s83
    %p95 = scmp.eq.s32.totalorder %s15, 15
    %p96 = por %p94, %p95
    %p98 = scmp.ne.s32.totalorder %s83, %s97
    %p99 = scmp.eq.s32.totalorder %s15, 0
    %p100 = por %p98, %p99
    %s101 = smul.u32 %s16, 8
    %s102 = sadd.s32 %s101, %s17
    %s103 = smul.u32 %s28, 8
    %s104 = sadd.s32 %s103, %s24
    %s105 = ssub.s32 %s102, %s104
    %p106 = scmp.eq.s32.totalorder %s105, 0
    %s108 = sadd.s32 %s107, 1
    %s109 = scalar_select %p106, %s107, %s108
    %p112 = pneg %p106
    %p113 = scmp.eq.s32.totalorder %s9, 15
    %p114 = por %p112, %p113
    %p115 = scmp.ne.s32.totalorder %s107, %s110
    %p116 = scmp.eq.s32.totalorder %s9, 0
    %p117 = por %p115, %p116
    %p118 = scmp.ne.s32.totalorder %s107, %s110
    %p119 = scmp.eq.s32.totalorder %s14, 15
    %p120 = por %p118, %p119
    %p121 = scmp.ne.s32.totalorder %s110, %s111
    %p122 = scmp.eq.s32.totalorder %s14, 0
    %p123 = por %p121, %p122
    %p124 = scmp.ne.s32.totalorder %s110, %s111
    %p125 = scmp.eq.s32.totalorder %s15, 15
    %p126 = por %p124, %p125
    %p128 = scmp.ne.s32.totalorder %s111, %s127
    %p129 = scmp.eq.s32.totalorder %s15, 0
    %p130 = por %p128, %p129
    %p131 = scmp.le.s32.totalorder 1, %s9
    %p132 = scmp.lt.s32.totalorder %s9, 17
    %p133 = pnand %p131, %p132
    %p134 = pneg %p133
    // Predicated region
    $region9: #{encoder_block_forward.5} parent=5 // pred_check
      _
    $region10: #{encoder_block_forward.5} parent=5 // pred_check_branch
      %136 = sbr.rel (%p133) target = $region12
    $region11: #{encoder_block_forward.5} parent=5 // pred_region
      %s137 = ssub.s32 %s9, 1
      // Predicated region
      $region13: #{encoder_block_forward.5} parent=11 // pred_check
        %p138 = pneg %p72
      $region14: #{encoder_block_forward.5} parent=11 // pred_check_branch
        %140 = sbr.rel (%p138) target = $region16
      $region15: #{encoder_block_forward.5} parent=11 // pred_region
        _
      $region16: #{encoder_block_forward.5} parent=11 // pred_fallthru
        _
      // Predicated region
      $region17: #{encoder_block_forward.5} parent=11 // pred_check
        %p141 = pneg %p93
      $region18: #{encoder_block_forward.5} parent=11 // pred_check_branch
        %143 = sbr.rel (%p141) target = $region20
      $region19: #{encoder_block_forward.5} parent=11 // pred_region
        _
      $region20: #{encoder_block_forward.5} parent=11 // pred_fallthru
        _
    $region12: #{encoder_block_forward.5} parent=5 // pred_fallthru
      _
    %p144 = scmp.lt.s32.totalorder %s9, 16
    // Predicated region
    $region21: #{encoder_block_forward.5} parent=5 // pred_check
      %p145 = pneg %p144
    $region22: #{encoder_block_forward.5} parent=5 // pred_check_branch
      %147 = sbr.rel (%p145) target = $region24
    $region23: #{encoder_block_forward.5} parent=5 // pred_region
      // Predicated region
      $region25: #{encoder_block_forward.5} parent=23 // pred_check
        %p148 = pneg %p45
      $region26: #{encoder_block_forward.5} parent=23 // pred_check_branch
        %150 = sbr.rel (%p148) target = $region28
      $region27: #{encoder_block_forward.5} parent=23 // pred_region
        %s151 = smul.u32 %s16, 8
        %s152 = sadd.s32 %s151, %s17
        %s153 = smul.u32 4, %s152
        %p154 = scmp.lt.s32.totalorder %s153, 63
        %s155 = scalar_select %p154, %s153, 63
        %s156 = smul.addr %s155, 8
        %s157 = scalar_lea.vmem %s0, %s156
        %s158 = smul.u32 %s16, 8
        %s159 = sadd.s32 %s158, %s17
        %s160 = smul.u32 4, %s159
      $region28: #{encoder_block_forward.5} parent=23 // pred_fallthru
        _
    $region24: #{encoder_block_forward.5} parent=5 // pred_fallthru
      _
    %p161 = scmp.le.s32.totalorder 1, %s9
    %p162 = scmp.lt.s32.totalorder %s9, 17
    %p163 = pnand %p161, %p162
    %p164 = pneg %p163
    // Predicated region
    $region29: #{encoder_block_forward.5} parent=5 // pred_check
      _
    $region30: #{encoder_block_forward.5} parent=5 // pred_check_branch
      %166 = sbr.rel (%p163) target = $region32
    $region31: #{encoder_block_forward.5} parent=5 // pred_region
      %s167 = ssub.s32 %s9, 1
      %s168 = smul.u32 %s18, 8
      %s169 = sadd.s32 %s168, %s19
      %s170 = smul.u32 4, %s169
      %p171 = scmp.lt.s32.totalorder %s170, 63
      %s172 = scalar_select %p171, %s170, 63
      %s173 = smul.addr %s172, 8
      %s174 = scalar_lea.vmem %s0, %s173
      %p175 = pneg %p51
      %p176 = pneg %p48
      %p177 = pneg %p72
      %p178 = pneg %p69
      %p179 = pneg %p93
      %p180 = pneg %p90
      %p181 = pneg %p123
      %p182 = pneg %p120
      %s183 = smul.u32 %s18, 8
      %s184 = sadd.s32 %s183, %s19
      %p185 = scmp.lt.s32.totalorder %s184, 15
      %s186 = scalar_select %p185, %s184, 15
      %s187 = smul.addr %s186, 8
      %s188 = scalar_lea.vmem %s3, %s187
      %s189 = smul.u32 %s18, 8
      %s190 = sadd.s32 %s189, %s19
      %s191 = smul.u32 4, %s190
      %p192 = scmp.lt.s32.totalorder %s191, 63
      %s193 = scalar_select %p192, %s191, 63
      %s194 = smul.addr %s193, 8
      %s195 = scalar_lea.vmem %s0, %s194
      %s196 = smul.u32 %s18, 8
      %s197 = sadd.s32 %s196, %s19
      %s198 = smul.u32 4, %s197
      %s199 = smul.u32 %s18, 8
      %s200 = sadd.s32 %s199, %s19
      %p201 = scmp.lt.s32.totalorder %s200, 15
      %s202 = scalar_select %p201, %s200, 15
      %s203 = smul.addr %s202, 8
      %s204 = scalar_lea.vmem %s3, %s203
      %s205 = smul.u32 %s18, 8
      %s206 = sadd.s32 %s205, %s19
      %v207 = vld [vmem:[%s1] sm:$0x1]
      %v208 = vld [vmem:[%s2] sm:$0x1]
      %v209 = vld [vmem:[%s195] sm:$0xff]
      %v211 = vlaneseq
      %v212 = vshrl.u32 %v211, 7
      %v213 = vsub.s32 0, %v212
      %v214 = vrot.slane %v207, %v213
      %v216 = vmul.f32 %v209, %v214
      %v218 = vlaneseq
      %v219 = vshrl.u32 %v218, 7
      %v220 = vsub.s32 0, %v219
      %v221 = vrot.slane %v208, %v220
      %v223 = vadd.f32 %v216, %v221
      %v224 = vmax.f32 %v223, 0.0
      %v225 = vld [vmem:[%s195 + $0x8] sm:$0xff]
      %v226 = vmul.f32 %v225, %v214
      %v227 = vadd.f32 %v226, %v221
      %v228 = vmax.f32 %v227, 0.0
      %v229 = vld [vmem:[%s195 + $0x10] sm:$0xff]
      %v230 = vmul.f32 %v229, %v214
      %v231 = vadd.f32 %v230, %v221
      %v232 = vmax.f32 %v231, 0.0
      %v233 = vld [vmem:[%s195 + $0x18] sm:$0xff]
      %v234 = vmul.f32 %v233, %v214
      %v235 = vadd.f32 %v234, %v221
      %v236 = vmax.f32 %v235, 0.0
      %v237 = vmax.f32 %v224, %v228
      %v238 = vmax.f32 %v232, %v236
      %v239 = vmax.f32 %v237, %v238
      %240 = vst [vmem:[%s204] sm:$0xff] %v239
      %s241 = smul.u32 %s18, 8
      %s242 = sadd.s32 %s241, %s19
      %p243 = scmp.lt.s32.totalorder %s242, 15
      %s244 = scalar_select %p243, %s242, 15
      %s245 = smul.addr %s244, 8
      %s246 = scalar_lea.vmem %s3, %s245
      // Predicated region
      $region33: #{encoder_block_forward.5} parent=31 // pred_check
        %p247 = pneg %p120
      $region34: #{encoder_block_forward.5} parent=31 // pred_check_branch
        %249 = sbr.rel (%p247) target = $region36
      $region35: #{encoder_block_forward.5} parent=31 // pred_region
        %s250 = smul.u32 %s18, 8
        %s251 = sadd.s32 %s250, %s19
      $region36: #{encoder_block_forward.5} parent=31 // pred_fallthru
        _
    $region32: #{encoder_block_forward.5} parent=5 // pred_fallthru
      _
    %p252 = scmp.le.s32.totalorder 2, %s9
    // Predicated region
    $region37: #{encoder_block_forward.5} parent=5 // pred_check
      %p253 = pneg %p252
    $region38: #{encoder_block_forward.5} parent=5 // pred_check_branch
      %255 = sbr.rel (%p253) target = $region40
    $region39: #{encoder_block_forward.5} parent=5 // pred_region
      %s256 = ssub.s32 %s9, 2
      // Predicated region
      $region41: #{encoder_block_forward.5} parent=39 // pred_check
        %p257 = pneg %p126
      $region42: #{encoder_block_forward.5} parent=39 // pred_check_branch
        %259 = sbr.rel (%p257) target = $region44
      $region43: #{encoder_block_forward.5} parent=39 // pred_region
        %s260 = smul.u32 %s20, 8
        %s261 = sadd.s32 %s260, %s21
        %p262 = scmp.lt.s32.totalorder %s261, 15
        %s263 = scalar_select %p262, %s261, 15
        %s264 = smul.addr %s263, 8
        %s265 = scalar_lea.vmem %s3, %s264
      $region44: #{encoder_block_forward.5} parent=39 // pred_fallthru
        _
    $region40: #{encoder_block_forward.5} parent=5 // pred_fallthru
      _
  $region6: #{encoder_block_forward.5} parent=0 // loop_footer
    %s13 = sadd.s32 1, %s9
  $region7: #{encoder_block_forward.5} parent=0 // loop_footer_branch
    %8 = sbr.rel target = $region3
  $region8: #{encoder_block_forward.5} parent=0 // loop_exit
    _

// kernel: encoder_block_forward.4
$region0: #{encoder_block_forward.4}
  #allocation0 [shape = 'u32[]', space=smem, size = 0x4, offset = 0x4, fixed_abs, tag = 'smem constant byte address 0x4 - core index']
  #allocation1 [shape = 'u32[144,128]{1,0:T(1,128)}', space=vmem, size = 0x12000, scoped, tag = 'internal scratch']
  %s0 = inlined_call_operand.vmem [shape: f32[512,128], index: 0, kind: input, shape index: {}]
  %s1 = inlined_call_operand.vmem [shape: f32[1,128], index: 1, kind: output, shape index: {0}]
  %s2 = inlined_call_operand.vmem [shape: f32[1,128], index: 2, kind: output, shape index: {1}]
  %3 = xla_tuple %s1, %s2
  %s4 = sld [smem:[#allocation0]]
  $region26: #{encoder_block_forward.4} parent=0
    _
  %s6 = ssub.s32 1, %s4
  %s7 = scalar_select 0, %s6, %s4
  // Predicated region
  $region2: #{encoder_block_forward.4} parent=0 // pred_check
    _
  $region3: #{encoder_block_forward.4} parent=0 // pred_check_branch
    %9 = sbr.rel (0) target = $region5
  $region4: #{encoder_block_forward.4} parent=0 // pred_region
    _
  $region5: #{encoder_block_forward.4} parent=0 // pred_fallthru
    _
  %p10 = scmp.eq.s32.totalorder 0, 0
  // Predicated region
  $region6: #{encoder_block_forward.4} parent=0 // pred_check
    %p11 = pneg %p10
  $region7: #{encoder_block_forward.4} parent=0 // pred_check_branch
    %13 = sbr.rel (%p11) target = $region9
  $region8: #{encoder_block_forward.4} parent=0 // pred_region
    %14 = vst [vmem:[%s1] sm:$0x1] 0.0
    %15 = vst [vmem:[%s2] sm:$0x1] 0.0
  $region9: #{encoder_block_forward.4} parent=0 // pred_fallthru
    _
  %v16 = vld [vmem:[%s0] sm:$0xff]
  %v17 = vld [vmem:[%s0 + $0x8] sm:$0xff]
  %v18 = vld [vmem:[%s0 + $0x10] sm:$0xff]
  %v19 = vld [vmem:[%s0 + $0x18] sm:$0xff]
  %v20 = vld [vmem:[%s0 + $0x20] sm:$0xff]
  %v21 = vld [vmem:[%s0 + $0x28] sm:$0xff]
  %v22 = vld [vmem:[%s0 + $0x30] sm:$0xff]
  %v23 = vld [vmem:[%s0 + $0x38] sm:$0xff]
  %v24 = vld [vmem:[%s0 + $0x40] sm:$0xff]
  %v25 = vld [vmem:[%s0 + $0x48] sm:$0xff]
  %v26 = vld [vmem:[%s0 + $0x50] sm:$0xff]
  %v27 = vld [vmem:[%s0 + $0x58] sm:$0xff]
  %v28 = vld [vmem:[%s0 + $0x60] sm:$0xff]
  %v29 = vld [vmem:[%s0 + $0x68] sm:$0xff]
  %v30 = vld [vmem:[%s0 + $0x70] sm:$0xff]
  %v31 = vld [vmem:[%s0 + $0x78] sm:$0xff]
  %v32 = vld [vmem:[%s0 + $0x80] sm:$0xff]
  %v33 = vld [vmem:[%s0 + $0x88] sm:$0xff]
  %v34 = vld [vmem:[%s0 + $0x90] sm:$0xff]
  %v35 = vld [vmem:[%s0 + $0x98] sm:$0xff]
  %v36 = vld [vmem:[%s0 + $0xa0] sm:$0xff]
  %v37 = vld [vmem:[%s0 + $0xa8] sm:$0xff]
  %v38 = vld [vmem:[%s0 + $0xb0] sm:$0xff]
  %v39 = vld [vmem:[%s0 + $0xb8] sm:$0xff]
  %v40 = vld [vmem:[%s0 + $0xc0] sm:$0xff]
  %v41 = vld [vmem:[%s0 + $0xc8] sm:$0xff]
  %v42 = vld [vmem:[%s0 + $0xd0] sm:$0xff]
  %v43 = vld [vmem:[%s0 + $0xd8] sm:$0xff]
  %v44 = vld [vmem:[%s0 + $0xe0] sm:$0xff]
  %v45 = vld [vmem:[%s0 + $0xe8] sm:$0xff]
  %v46 = vld [vmem:[%s0 + $0xf0] sm:$0xff]
  %v47 = vld [vmem:[%s0 + $0xf8] sm:$0xff]
  %v48 = vld [vmem:[%s0 + $0x100] sm:$0xff]
  %v49 = vld [vmem:[%s0 + $0x108] sm:$0xff]
  %v50 = vld [vmem:[%s0 + $0x110] sm:$0xff]
  %v51 = vld [vmem:[%s0 + $0x118] sm:$0xff]
  %v52 = vld [vmem:[%s0 + $0x120] sm:$0xff]
  %v53 = vld [vmem:[%s0 + $0x128] sm:$0xff]
  %v54 = vld [vmem:[%s0 + $0x130] sm:$0xff]
  %v55 = vld [vmem:[%s0 + $0x138] sm:$0xff]
  %v56 = vld [vmem:[%s0 + $0x140] sm:$0xff]
  %v57 = vld [vmem:[%s0 + $0x148] sm:$0xff]
  %v58 = vld [vmem:[%s0 + $0x150] sm:$0xff]
  %v59 = vld [vmem:[%s0 + $0x158] sm:$0xff]
  %v60 = vld [vmem:[%s0 + $0x160] sm:$0xff]
  %v61 = vld [vmem:[%s0 + $0x168] sm:$0xff]
  %v62 = vld [vmem:[%s0 + $0x170] sm:$0xff]
  %v63 = vld [vmem:[%s0 + $0x178] sm:$0xff]
  %v64 = vld [vmem:[%s0 + $0x180] sm:$0xff]
  %v65 = vld [vmem:[%s0 + $0x188] sm:$0xff]
  %v66 = vld [vmem:[%s0 + $0x190] sm:$0xff]
  %v67 = vld [vmem:[%s0 + $0x198] sm:$0xff]
  %v68 = vld [vmem:[%s0 + $0x1a0] sm:$0xff]
  %v69 = vld [vmem:[%s0 + $0x1a8] sm:$0xff]
  %v70 = vld [vmem:[%s0 + $0x1b0] sm:$0xff]
  %v71 = vld [vmem:[%s0 + $0x1b8] sm:$0xff]
  %v72 = vld [vmem:[%s0 + $0x1c0] sm:$0xff]
  %v73 = vld [vmem:[%s0 + $0x1c8] sm:$0xff]
  %v74 = vld [vmem:[%s0 + $0x1d0] sm:$0xff]
  %v75 = vld [vmem:[%s0 + $0x1d8] sm:$0xff]
  %v76 = vld [vmem:[%s0 + $0x1e0] sm:$0xff]
  %v77 = vld [vmem:[%s0 + $0x1e8] sm:$0xff]
  %v78 = vld [vmem:[%s0 + $0x1f0] sm:$0xff]
  %v79 = vld [vmem:[%s0 + $0x1f8] sm:$0xff]
  %v80 = vlaneseq
  %v81 = vshrl.u32 %v80, 7
  %v82 = vadd.s32 %v81, 8
  %v83 = vadd.s32 %v81, 16
  %v84 = vadd.s32 %v81, 24
  %v85 = vadd.s32 %v81, 32
  %v86 = vadd.s32 %v81, 40
  %v87 = vadd.s32 %v81, 48
  %v88 = vadd.s32 %v81, 56
  %v89 = vadd.s32 %v81, 64
  %v90 = vadd.s32 %v81, 72
  %v91 = vadd.s32 %v81, 80
  %v92 = vadd.s32 %v81, 88
  %v93 = vadd.s32 %v81, 96
  %v94 = vadd.s32 %v81, 104
  %v95 = vadd.s32 %v81, 112
  %v96 = vadd.s32 %v81, 120
  %v97 = vadd.s32 %v81, 128
  %v98 = vadd.s32 %v81, 136
  %v99 = vadd.s32 %v81, 144
  %v100 = vadd.s32 %v81, 152
  %v101 = vadd.s32 %v81, 160
  %v102 = vadd.s32 %v81, 168
  %v103 = vadd.s32 %v81, 176
  %v104 = vadd.s32 %v81, 184
  %v105 = vadd.s32 %v81, 192
  %v106 = vadd.s32 %v81, 200
  %v107 = vadd.s32 %v81, 208
  %v108 = vadd.s32 %v81, 216
  %v109 = vadd.s32 %v81, 224
  %v110 = vadd.s32 %v81, 232
  %v111 = vadd.s32 %v81, 240
  %v112 = vadd.s32 %v81, 248
  %v113 = vadd.s32 %v81, 256
  %v114 = vadd.s32 %v81, 264
  %v115 = vadd.s32 %v81, 272
  %v116 = vadd.s32 %v81, 280
  %v117 = vadd.s32 %v81, 288
  %v118 = vadd.s32 %v81, 296
  %v119 = vadd.s32 %v81, 304
  %v120 = vadd.s32 %v81, 312
  %v121 = vadd.s32 %v81, 320
  %v122 = vadd.s32 %v81, 328
  %v123 = vadd.s32 %v81, 336
  %v124 = vadd.s32 %v81, 344
  %v125 = vadd.s32 %v81, 352
  %v126 = vadd.s32 %v81, 360
  %v127 = vadd.s32 %v81, 368
  %v128 = vadd.s32 %v81, 376
  %v129 = vadd.s32 %v81, 384
  %v130 = vadd.s32 %v81, 392
  %v131 = vadd.s32 %v81, 400
  %v132 = vadd.s32 %v81, 408
  %v133 = vadd.s32 %v81, 416
  %v134 = vadd.s32 %v81, 424
  %v135 = vadd.s32 %v81, 432
  %v136 = vadd.s32 %v81, 440
  %v137 = vadd.s32 %v81, 448
  %v138 = vadd.s32 %v81, 456
  %v139 = vadd.s32 %v81, 464
  %v140 = vadd.s32 %v81, 472
  %v141 = vadd.s32 %v81, 480
  %v142 = vadd.s32 %v81, 488
  %v143 = vadd.s32 %v81, 496
  %v144 = vadd.s32 %v81, 504
  %s145 = smul.u32 0, 512
  %v146 = vstv %s145
  %v147 = vadd.s32 %v81, %v146
  %v148 = vadd.s32 %v82, %v146
  %v149 = vadd.s32 %v83, %v146
  %v150 = vadd.s32 %v84, %v146
  %v151 = vadd.s32 %v85, %v146
  %v152 = vadd.s32 %v86, %v146
  %v153 = vadd.s32 %v87, %v146
  %v154 = vadd.s32 %v88, %v146
  %v155 = vadd.s32 %v89, %v146
  %v156 = vadd.s32 %v90, %v146
  %v157 = vadd.s32 %v91, %v146
  %v158 = vadd.s32 %v92, %v146
  %v159 = vadd.s32 %v93, %v146
  %v160 = vadd.s32 %v94, %v146
  %v161 = vadd.s32 %v95, %v146
  %v162 = vadd.s32 %v96, %v146
  %v163 = vadd.s32 %v97, %v146
  %v164 = vadd.s32 %v98, %v146
  %v165 = vadd.s32 %v99, %v146
  %v166 = vadd.s32 %v100, %v146
  %v167 = vadd.s32 %v101, %v146
  %v168 = vadd.s32 %v102, %v146
  %v169 = vadd.s32 %v103, %v146
  %v170 = vadd.s32 %v104, %v146
  %v171 = vadd.s32 %v105, %v146
  %v172 = vadd.s32 %v106, %v146
  %v173 = vadd.s32 %v107, %v146
  %v174 = vadd.s32 %v108, %v146
  %v175 = vadd.s32 %v109, %v146
  %v176 = vadd.s32 %v110, %v146
  %v177 = vadd.s32 %v111, %v146
  %v178 = vadd.s32 %v112, %v146
  %v179 = vadd.s32 %v113, %v146
  %v180 = vadd.s32 %v114, %v146
  %v181 = vadd.s32 %v115, %v146
  %v182 = vadd.s32 %v116, %v146
  %v183 = vadd.s32 %v117, %v146
  %v184 = vadd.s32 %v118, %v146
  %v185 = vadd.s32 %v119, %v146
  %v186 = vadd.s32 %v120, %v146
  %v187 = vadd.s32 %v121, %v146
  %v188 = vadd.s32 %v122, %v146
  %v189 = vadd.s32 %v123, %v146
  %v190 = vadd.s32 %v124, %v146
  %v191 = vadd.s32 %v125, %v146
  %v192 = vadd.s32 %v126, %v146
  %v193 = vadd.s32 %v127, %v146
  %v194 = vadd.s32 %v128, %v146
  %v195 = vadd.s32 %v129, %v146
  %v196 = vadd.s32 %v130, %v146
  %v197 = vadd.s32 %v131, %v146
  %v198 = vadd.s32 %v132, %v146
  %v199 = vadd.s32 %v133, %v146
  %v200 = vadd.s32 %v134, %v146
  %v201 = vadd.s32 %v135, %v146
  %v202 = vadd.s32 %v136, %v146
  %v203 = vadd.s32 %v137, %v146
  %v204 = vadd.s32 %v138, %v146
  %v205 = vadd.s32 %v139, %v146
  %v206 = vadd.s32 %v140, %v146
  %v207 = vadd.s32 %v141, %v146
  %v208 = vadd.s32 %v142, %v146
  %v209 = vadd.s32 %v143, %v146
  %v210 = vadd.s32 %v144, %v146
  %vm211 = vcmp.lt.s32.totalorder %v147, 512
  %vm212 = vcmp.lt.s32.totalorder %v148, 512
  %vm213 = vcmp.lt.s32.totalorder %v149, 512
  %vm214 = vcmp.lt.s32.totalorder %v150, 512
  %vm215 = vcmp.lt.s32.totalorder %v151, 512
  %vm216 = vcmp.lt.s32.totalorder %v152, 512
  %vm217 = vcmp.lt.s32.totalorder %v153, 512
  %vm218 = vcmp.lt.s32.totalorder %v154, 512
  %vm219 = vcmp.lt.s32.totalorder %v155, 512
  %vm220 = vcmp.lt.s32.totalorder %v156, 512
  %vm221 = vcmp.lt.s32.totalorder %v157, 512
  %vm222 = vcmp.lt.s32.totalorder %v158, 512
  %vm223 = vcmp.lt.s32.totalorder %v159, 512
  %vm224 = vcmp.lt.s32.totalorder %v160, 512
  %vm225 = vcmp.lt.s32.totalorder %v161, 512
  %vm226 = vcmp.lt.s32.totalorder %v162, 512
  %vm227 = vcmp.lt.s32.totalorder %v163, 512
  %vm228 = vcmp.lt.s32.totalorder %v164, 512
  %vm229 = vcmp.lt.s32.totalorder %v165, 512
  %vm230 = vcmp.lt.s32.totalorder %v166, 512
  %vm231 = vcmp.lt.s32.totalorder %v167, 512
  %vm232 = vcmp.lt.s32.totalorder %v168, 512
  %vm233 = vcmp.lt.s32.totalorder %v169, 512
  %vm234 = vcmp.lt.s32.totalorder %v170, 512
  %vm235 = vcmp.lt.s32.totalorder %v171, 512
  %vm236 = vcmp.lt.s32.totalorder %v172, 512
  %vm237 = vcmp.lt.s32.totalorder %v173, 512
  %vm238 = vcmp.lt.s32.totalorder %v174, 512
  %vm239 = vcmp.lt.s32.totalorder %v175, 512
  %vm240 = vcmp.lt.s32.totalorder %v176, 512
  %vm241 = vcmp.lt.s32.totalorder %v177, 512
  %vm242 = vcmp.lt.s32.totalorder %v178, 512
  %vm243 = vcmp.lt.s32.totalorder %v179, 512
  %vm244 = vcmp.lt.s32.totalorder %v180, 512
  %vm245 = vcmp.lt.s32.totalorder %v181, 512
  %vm246 = vcmp.lt.s32.totalorder %v182, 512
  %vm247 = vcmp.lt.s32.totalorder %v183, 512
  %vm248 = vcmp.lt.s32.totalorder %v184, 512
  %vm249 = vcmp.lt.s32.totalorder %v185, 512
  %vm250 = vcmp.lt.s32.totalorder %v186, 512
  %vm251 = vcmp.lt.s32.totalorder %v187, 512
  %vm252 = vcmp.lt.s32.totalorder %v188, 512
  %vm253 = vcmp.lt.s32.totalorder %v189, 512
  %vm254 = vcmp.lt.s32.totalorder %v190, 512
  %vm255 = vcmp.lt.s32.totalorder %v191, 512
  %vm256 = vcmp.lt.s32.totalorder %v192, 512
  %vm257 = vcmp.lt.s32.totalorder %v193, 512
  %vm258 = vcmp.lt.s32.totalorder %v194, 512
  %vm259 = vcmp.lt.s32.totalorder %v195, 512
  %vm260 = vcmp.lt.s32.totalorder %v196, 512
  %vm261 = vcmp.lt.s32.totalorder %v197, 512
  %vm262 = vcmp.lt.s32.totalorder %v198, 512
  %vm263 = vcmp.lt.s32.totalorder %v199, 512
  %vm264 = vcmp.lt.s32.totalorder %v200, 512
  %vm265 = vcmp.lt.s32.totalorder %v201, 512
  %vm266 = vcmp.lt.s32.totalorder %v202, 512
  %vm267 = vcmp.lt.s32.totalorder %v203, 512
  %vm268 = vcmp.lt.s32.totalorder %v204, 512
  %vm269 = vcmp.lt.s32.totalorder %v205, 512
  %vm270 = vcmp.lt.s32.totalorder %v206, 512
  %vm271 = vcmp.lt.s32.totalorder %v207, 512
  %vm272 = vcmp.lt.s32.totalorder %v208, 512
  %vm273 = vcmp.lt.s32.totalorder %v209, 512
  %vm274 = vcmp.lt.s32.totalorder %v210, 512
  %v275 = vsel %vm211, %v16, 0.0
  %v276 = vsel %vm212, %v17, 0.0
  %v277 = vsel %vm213, %v18, 0.0
  %v278 = vsel %vm214, %v19, 0.0
  %v279 = vsel %vm215, %v20, 0.0
  %v280 = vsel %vm216, %v21, 0.0
  %v281 = vsel %vm217, %v22, 0.0
  %v282 = vsel %vm218, %v23, 0.0
  %v283 = vsel %vm219, %v24, 0.0
  %v284 = vsel %vm220, %v25, 0.0
  %v285 = vsel %vm221, %v26, 0.0
  %v286 = vsel %vm222, %v27, 0.0
  %v287 = vsel %vm223, %v28, 0.0
  %v288 = vsel %vm224, %v29, 0.0
  %v289 = vsel %vm225, %v30, 0.0
  %v290 = vsel %vm226, %v31, 0.0
  %v291 = vsel %vm227, %v32, 0.0
  %v292 = vsel %vm228, %v33, 0.0
  %v293 = vsel %vm229, %v34, 0.0
  %v294 = vsel %vm230, %v35, 0.0
  %v295 = vsel %vm231, %v36, 0.0
  %v296 = vsel %vm232, %v37, 0.0
  %v297 = vsel %vm233, %v38, 0.0
  %v298 = vsel %vm234, %v39, 0.0
  %v299 = vsel %vm235, %v40, 0.0
  %v300 = vsel %vm236, %v41, 0.0
  %v301 = vsel %vm237, %v42, 0.0
  %v302 = vsel %vm238, %v43, 0.0
  %v303 = vsel %vm239, %v44, 0.0
  %v304 = vsel %vm240, %v45, 0.0
  %v305 = vsel %vm241, %v46, 0.0
  %v306 = vsel %vm242, %v47, 0.0
  %v307 = vsel %vm243, %v48, 0.0
  %v308 = vsel %vm244, %v49, 0.0
  %v309 = vsel %vm245, %v50, 0.0
  %v310 = vsel %vm246, %v51, 0.0
  %v311 = vsel %vm247, %v52, 0.0
  %v312 = vsel %vm248, %v53, 0.0
  %v313 = vsel %vm249, %v54, 0.0
  %v314 = vsel %vm250, %v55, 0.0
  %v315 = vsel %vm251, %v56, 0.0
  %v316 = vsel %vm252, %v57, 0.0
  %v317 = vsel %vm253, %v58, 0.0
  %v318 = vsel %vm254, %v59, 0.0
  %v319 = vsel %vm255, %v60, 0.0
  %v320 = vsel %vm256, %v61, 0.0
  %v321 = vsel %vm257, %v62, 0.0
  %v322 = vsel %vm258, %v63, 0.0
  %v323 = vsel %vm259, %v64, 0.0
  %v324 = vsel %vm260, %v65, 0.0
  %v325 = vsel %vm261, %v66, 0.0
  %v326 = vsel %vm262, %v67, 0.0
  %v327 = vsel %vm263, %v68, 0.0
  %v328 = vsel %vm264, %v69, 0.0
  %v329 = vsel %vm265, %v70, 0.0
  %v330 = vsel %vm266, %v71, 0.0
  %v331 = vsel %vm267, %v72, 0.0
  %v332 = vsel %vm268, %v73, 0.0
  %v333 = vsel %vm269, %v74, 0.0
  %v334 = vsel %vm270, %v75, 0.0
  %v335 = vsel %vm271, %v76, 0.0
  %v336 = vsel %vm272, %v77, 0.0
  %v337 = vsel %vm273, %v78, 0.0
  %v338 = vsel %vm274, %v79, 0.0
  %v339 = vld [vmem:[%s1] sm:$0x1]
  %v340 = vadd.f32 %v275, %v276
  %v341 = vadd.f32 %v340, %v277
  %v342 = vadd.f32 %v341, %v278
  %v343 = vadd.f32 %v342, %v279
  %v344 = vadd.f32 %v343, %v280
  %v345 = vadd.f32 %v344, %v281
  %v346 = vadd.f32 %v345, %v282
  %v347 = vadd.f32 %v346, %v283
  %v348 = vadd.f32 %v347, %v284
  %v349 = vadd.f32 %v348, %v285
  %v350 = vadd.f32 %v349, %v286
  %v351 = vadd.f32 %v350, %v287
  %v352 = vadd.f32 %v351, %v288
  %v353 = vadd.f32 %v352, %v289
  %v354 = vadd.f32 %v353, %v290
  %v355 = vadd.f32 %v354, %v291
  %v356 = vadd.f32 %v355, %v292
  %v357 = vadd.f32 %v356, %v293
  %v358 = vadd.f32 %v357, %v294
  %v359 = vadd.f32 %v358, %v295
  %v360 = vadd.f32 %v359, %v296
  %v361 = vadd.f32 %v360, %v297
  %v362 = vadd.f32 %v361, %v298
  %v363 = vadd.f32 %v362, %v299
  %v364 = vadd.f32 %v363, %v300
  %v365 = vadd.f32 %v364, %v301
  %v366 = vadd.f32 %v365, %v302
  %v367 = vadd.f32 %v366, %v303
  %v368 = vadd.f32 %v367, %v304
  %v369 = vadd.f32 %v368, %v305
  %v370 = vadd.f32 %v369, %v306
  %v371 = vadd.f32 %v370, %v307
  %v372 = vadd.f32 %v371, %v308
  %v373 = vadd.f32 %v372, %v309
  %v374 = vadd.f32 %v373, %v310
  %v375 = vadd.f32 %v374, %v311
  %v376 = vadd.f32 %v375, %v312
  %v377 = vadd.f32 %v376, %v313
  %v378 = vadd.f32 %v377, %v314
  %v379 = vadd.f32 %v378, %v315
  %v380 = vadd.f32 %v379, %v316
  %v381 = vadd.f32 %v380, %v317
  %v382 = vadd.f32 %v381, %v318
  %v383 = vadd.f32 %v382, %v319
  %v384 = vadd.f32 %v383, %v320
  %v385 = vadd.f32 %v384, %v321
  %v386 = vadd.f32 %v385, %v322
  %v387 = vadd.f32 %v386, %v323
  %v388 = vadd.f32 %v387, %v324
  %v389 = vadd.f32 %v388, %v325
  %v390 = vadd.f32 %v389, %v326
  %v391 = vadd.f32 %v390, %v327
  %v392 = vadd.f32 %v391, %v328
  %v393 = vadd.f32 %v392, %v329
  %v394 = vadd.f32 %v393, %v330
  %v395 = vadd.f32 %v394, %v331
  %v396 = vadd.f32 %v395, %v332
  %v397 = vadd.f32 %v396, %v333
  %v398 = vadd.f32 %v397, %v334
  %v399 = vadd.f32 %v398, %v335
  %v400 = vadd.f32 %v399, %v336
  %v401 = vadd.f32 %v400, %v337
  %v402 = vadd.f32 %v401, %v338
  %v403 = vrot.slane %v402, 4
  %v404 = vadd.f32 %v402, %v403
  %v405 = vrot.slane %v404, 2
  %v406 = vadd.f32 %v404, %v405
  %v407 = vrot.slane %v406, 1
  %v408 = vadd.f32 %v406, %v407
  %v409 = vadd.f32 %v339, %v408
  %410 = vst [vmem:[%s1] sm:$0x1] %v409
  %v411 = vld [vmem:[%s2] sm:$0x1]
  %v412 = vmul.f32 %v275, %v275
  %v413 = vmul.f32 %v276, %v276
  %v414 = vmul.f32 %v277, %v277
  %v415 = vmul.f32 %v278, %v278
  %v416 = vmul.f32 %v279, %v279
  %v417 = vmul.f32 %v280, %v280
  %v418 = vmul.f32 %v281, %v281
  %v419 = vmul.f32 %v282, %v282
  %v420 = vmul.f32 %v283, %v283
  %v421 = vmul.f32 %v284, %v284
  %v422 = vmul.f32 %v285, %v285
  %v423 = vmul.f32 %v286, %v286
  %v424 = vmul.f32 %v287, %v287
  %v425 = vmul.f32 %v288, %v288
  %v426 = vmul.f32 %v289, %v289
  %v427 = vmul.f32 %v290, %v290
  %v428 = vmul.f32 %v291, %v291
  %v429 = vmul.f32 %v292, %v292
  %v430 = vmul.f32 %v293, %v293
  %v431 = vmul.f32 %v294, %v294
  %v432 = vmul.f32 %v295, %v295
  %v433 = vmul.f32 %v296, %v296
  %v434 = vmul.f32 %v297, %v297
  %v435 = vmul.f32 %v298, %v298
  %v436 = vmul.f32 %v299, %v299
  %v437 = vmul.f32 %v300, %v300
  %v438 = vmul.f32 %v301, %v301
  %v439 = vmul.f32 %v302, %v302
  %v440 = vmul.f32 %v303, %v303
  %v441 = vmul.f32 %v304, %v304
  %v442 = vmul.f32 %v305, %v305
  %v443 = vmul.f32 %v306, %v306
  %v444 = vmul.f32 %v307, %v307
  %v445 = vmul.f32 %v308, %v308
  %v446 = vmul.f32 %v309, %v309
  %v447 = vmul.f32 %v310, %v310
  %v448 = vmul.f32 %v311, %v311
  %v449 = vmul.f32 %v312, %v312
  %v450 = vmul.f32 %v313, %v313
  %v451 = vmul.f32 %v314, %v314
  %v452 = vmul.f32 %v315, %v315
  %v453 = vmul.f32 %v316, %v316
  %v454 = vmul.f32 %v317, %v317
  %v455 = vmul.f32 %v318, %v318
  %v456 = vmul.f32 %v319, %v319
  %v457 = vmul.f32 %v320, %v320
  %v458 = vmul.f32 %v321, %v321
  %v459 = vmul.f32 %v322, %v322
  %v460 = vmul.f32 %v323, %v323
  %v461 = vmul.f32 %v324, %v324
  %v462 = vmul.f32 %v325, %v325
  %v463 = vmul.f32 %v326, %v326
  %v464 = vmul.f32 %v327, %v327
  %v465 = vmul.f32 %v328, %v328
  %v466 = vmul.f32 %v329, %v329
  %v467 = vmul.f32 %v330, %v330
  %v468 = vmul.f32 %v331, %v331
  %v469 = vmul.f32 %v332, %v332
  %v470 = vmul.f32 %v333, %v333
  %v471 = vmul.f32 %v334, %v334
  %v472 = vmul.f32 %v335, %v335
  %v473 = vmul.f32 %v336, %v336
  %v474 = vmul.f32 %v337, %v337
  %v475 = vmul.f32 %v338, %v338
  %v476 = vadd.f32 %v412, %v413
  %v477 = vadd.f32 %v476, %v414
  %v478 = vadd.f32 %v477, %v415
  %v479 = vadd.f32 %v478, %v416
  %v480 = vadd.f32 %v479, %v417
  %v481 = vadd.f32 %v480, %v418
  %v482 = vadd.f32 %v481, %v419
  %v483 = vadd.f32 %v482, %v420
  %v484 = vadd.f32 %v483, %v421
  %v485 = vadd.f32 %v484, %v422
  %v486 = vadd.f32 %v485, %v423
  %v487 = vadd.f32 %v486, %v424
  %v488 = vadd.f32 %v487, %v425
  %v489 = vadd.f32 %v488, %v426
  %v490 = vadd.f32 %v489, %v427
  %v491 = vadd.f32 %v490, %v428
  %v492 = vadd.f32 %v491, %v429
  %v493 = vadd.f32 %v492, %v430
  %v494 = vadd.f32 %v493, %v431
  %v495 = vadd.f32 %v494, %v432
  %v496 = vadd.f32 %v495, %v433
  %v497 = vadd.f32 %v496, %v434
  %v498 = vadd.f32 %v497, %v435
  %v499 = vadd.f32 %v498, %v436
  %v500 = vadd.f32 %v499, %v437
  %v501 = vadd.f32 %v500, %v438
  %v502 = vadd.f32 %v501, %v439
  %v503 = vadd.f32 %v502, %v440
  %v504 = vadd.f32 %v503, %v441
  %v505 = vadd.f32 %v504, %v442
  %v506 = vadd.f32 %v505, %v443
  %v507 = vadd.f32 %v506, %v444
  %v508 = vadd.f32 %v507, %v445
  %v509 = vadd.f32 %v508, %v446
  %v510 = vadd.f32 %v509, %v447
  %v511 = vadd.f32 %v510, %v448
  %v512 = vadd.f32 %v511, %v449
  %v513 = vadd.f32 %v512, %v450
  %v514 = vadd.f32 %v513, %v451
  %v515 = vadd.f32 %v514, %v452
  %v516 = vadd.f32 %v515, %v453
  %v517 = vadd.f32 %v516, %v454
  %v518 = vadd.f32 %v517, %v455
  %v519 = vadd.f32 %v518, %v456
  %v520 = vadd.f32 %v519, %v457
  %v521 = vadd.f32 %v520, %v458
  %v522 = vadd.f32 %v521, %v459
  %v523 = vadd.f32 %v522, %v460
  %v524 = vadd.f32 %v523, %v461
  %v525 = vadd.f32 %v524, %v462
  %v526 = vadd.f32 %v525, %v463
  %v527 = vadd.f32 %v526, %v464
  %v528 = vadd.f32 %v527, %v465
  %v529 = vadd.f32 %v528, %v466
  %v530 = vadd.f32 %v529, %v467
  %v531 = vadd.f32 %v530, %v468
  %v532 = vadd.f32 %v531, %v469
  %v533 = vadd.f32 %v532, %v470
  %v534 = vadd.f32 %v533, %v471
  %v535 = vadd.f32 %v534, %v472
  %v536 = vadd.f32 %v535, %v473
  %v537 = vadd.f32 %v536, %v474
  %v538 = vadd.f32 %v537, %v475
  %v539 = vrot.slane %v538, 4
  %v540 = vadd.f32 %v538, %v539
  %v541 = vrot.slane %v540, 2
  %v542 = vadd.f32 %v540, %v541
  %v543 = vrot.slane %v542, 1
  %v544 = vadd.f32 %v542, %v543
  %v545 = vadd.f32 %v411, %v544
  %546 = vst [vmem:[%s2] sm:$0x1] %v545
  // Predicated region
  $region10: #{encoder_block_forward.4} parent=0 // pred_check
    _
  $region11: #{encoder_block_forward.4} parent=0 // pred_check_branch
    %548 = sbr.rel (0) target = $region13
  $region12: #{encoder_block_forward.4} parent=0 // pred_region
    _
  $region13: #{encoder_block_forward.4} parent=0 // pred_fallthru
    _
  // Predicated region
  $region14: #{encoder_block_forward.4} parent=0 // pred_check
    _
  $region15: #{encoder_block_forward.4} parent=0 // pred_check_branch
    %550 = sbr.rel (0) target = $region17
  $region16: #{encoder_block_forward.4} parent=0 // pred_region
    _
  $region17: #{encoder_block_forward.4} parent=0 // pred_fallthru
    _
  // Predicated region
  $region18: #{encoder_block_forward.4} parent=0 // pred_check
    _
  $region19: #{encoder_block_forward.4} parent=0 // pred_check_branch
    %552 = sbr.rel (0) target = $region21
  $region20: #{encoder_block_forward.4} parent=0 // pred_region
    _
  $region21: #{encoder_block_forward.4} parent=0 // pred_fallthru
    _
  // Predicated region
  $region22: #{encoder_block_forward.4} parent=0 // pred_check
    _
  $region23: #{encoder_block_forward.4} parent=0 // pred_check_branch
    %554 = sbr.rel (0) target = $region25
  $region24: #{encoder_block_forward.4} parent=0 // pred_region
    _
  $region25: #{encoder_block_forward.4} parent=0 // pred_fallthru
    _

// kernel: encoder_block_forward.3
$region0: #{encoder_block_forward.3}
  #allocation0 [shape = 'u32[]', space=smem, size = 0x4, offset = 0x4, fixed_abs, tag = 'smem constant byte address 0x4 - core index']
  #allocation1 [shape = 'u32[144,128]{1,0:T(1,128)}', space=vmem, size = 0x12000, scoped, tag = 'internal scratch']
  #allocation2 [shape = 'f32[512,128]{1,0:T(8,128)}', space=vmem, size = 0x40000, scoped, tag = 'scratch operand']
  %s0 = inlined_call_operand.vmem [shape: bf16[512,128], index: 0, kind: input, shape index: {}]
  %s1 = inlined_call_operand.vmem [shape: bf16[128,128], index: 1, kind: input, shape index: {}]
  %s2 = inlined_call_operand.vmem [shape: f32[1,128], index: 2, kind: input, shape index: {}]
  %s3 = inlined_call_operand.vmem [shape: f32[512,128], index: 3, kind: output, shape index: {}]
  %s4 = sld [smem:[#allocation0]]
  $region30: #{encoder_block_forward.3} parent=0
    _
  %s6 = ssub.s32 1, %s4
  %s7 = scalar_select 0, %s6, %s4
  // Predicated region
  $region2: #{encoder_block_forward.3} parent=0 // pred_check
    _
  $region3: #{encoder_block_forward.3} parent=0 // pred_check_branch
    %9 = sbr.rel (0) target = $region5
  $region4: #{encoder_block_forward.3} parent=0 // pred_region
    _
  $region5: #{encoder_block_forward.3} parent=0 // pred_fallthru
    _
  // Predicated region
  $region6: #{encoder_block_forward.3} parent=0 // pred_check
    _
  $region7: #{encoder_block_forward.3} parent=0 // pred_check_branch
    %11 = sbr.rel (0) target = $region9
  $region8: #{encoder_block_forward.3} parent=0 // pred_region
    _
  $region9: #{encoder_block_forward.3} parent=0 // pred_fallthru
    _
  // Predicated region
  $region10: #{encoder_block_forward.3} parent=0 // pred_check
    _
  $region11: #{encoder_block_forward.3} parent=0 // pred_check_branch
    %13 = sbr.rel (0) target = $region13
  $region12: #{encoder_block_forward.3} parent=0 // pred_region
    _
  $region13: #{encoder_block_forward.3} parent=0 // pred_fallthru
    _
  %p15 = scmp.eq.s32.totalorder 0, 0
  // Predicated region
  $region14: #{encoder_block_forward.3} parent=0 // pred_check
    %p16 = pneg %p15
  $region15: #{encoder_block_forward.3} parent=0 // pred_check_branch
    %18 = sbr.rel (%p16) target = $region17
  $region16: #{encoder_block_forward.3} parent=0 // pred_region
    %19 = vst [vmem:[#allocation2] sm:$0xff] 0.0
    %20 = vst [vmem:[#allocation2 + $0x8] sm:$0xff] 0.0
    %21 = vst [vmem:[#allocation2 + $0x10] sm:$0xff] 0.0
    %22 = vst [vmem:[#allocation2 + $0x18] sm:$0xff] 0.0
    %23 = vst [vmem:[#allocation2 + $0x20] sm:$0xff] 0.0
    %24 = vst [vmem:[#allocation2 + $0x28] sm:$0xff] 0.0
    %25 = vst [vmem:[#allocation2 + $0x30] sm:$0xff] 0.0
    %26 = vst [vmem:[#allocation2 + $0x38] sm:$0xff] 0.0
    %27 = vst [vmem:[#allocation2 + $0x40] sm:$0xff] 0.0
    %28 = vst [vmem:[#allocation2 + $0x48] sm:$0xff] 0.0
    %29 = vst [vmem:[#allocation2 + $0x50] sm:$0xff] 0.0
    %30 = vst [vmem:[#allocation2 + $0x58] sm:$0xff] 0.0
    %31 = vst [vmem:[#allocation2 + $0x60] sm:$0xff] 0.0
    %32 = vst [vmem:[#allocation2 + $0x68] sm:$0xff] 0.0
    %33 = vst [vmem:[#allocation2 + $0x70] sm:$0xff] 0.0
    %34 = vst [vmem:[#allocation2 + $0x78] sm:$0xff] 0.0
    %35 = vst [vmem:[#allocation2 + $0x80] sm:$0xff] 0.0
    %36 = vst [vmem:[#allocation2 + $0x88] sm:$0xff] 0.0
    %37 = vst [vmem:[#allocation2 + $0x90] sm:$0xff] 0.0
    %38 = vst [vmem:[#allocation2 + $0x98] sm:$0xff] 0.0
    %39 = vst [vmem:[#allocation2 + $0xa0] sm:$0xff] 0.0
    %40 = vst [vmem:[#allocation2 + $0xa8] sm:$0xff] 0.0
    %41 = vst [vmem:[#allocation2 + $0xb0] sm:$0xff] 0.0
    %42 = vst [vmem:[#allocation2 + $0xb8] sm:$0xff] 0.0
    %43 = vst [vmem:[#allocation2 + $0xc0] sm:$0xff] 0.0
    %44 = vst [vmem:[#allocation2 + $0xc8] sm:$0xff] 0.0
    %45 = vst [vmem:[#allocation2 + $0xd0] sm:$0xff] 0.0
    %46 = vst [vmem:[#allocation2 + $0xd8] sm:$0xff] 0.0
    %47 = vst [vmem:[#allocation2 + $0xe0] sm:$0xff] 0.0
    %48 = vst [vmem:[#allocation2 + $0xe8] sm:$0xff] 0.0
    %49 = vst [vmem:[#allocation2 + $0xf0] sm:$0xff] 0.0
    %50 = vst [vmem:[#allocation2 + $0xf8] sm:$0xff] 0.0
    %51 = vst [vmem:[#allocation2 + $0x100] sm:$0xff] 0.0
    %52 = vst [vmem:[#allocation2 + $0x108] sm:$0xff] 0.0
    %53 = vst [vmem:[#allocation2 + $0x110] sm:$0xff] 0.0
    %54 = vst [vmem:[#allocation2 + $0x118] sm:$0xff] 0.0
    %55 = vst [vmem:[#allocation2 + $0x120] sm:$0xff] 0.0
    %56 = vst [vmem:[#allocation2 + $0x128] sm:$0xff] 0.0
    %57 = vst [vmem:[#allocation2 + $0x130] sm:$0xff] 0.0
    %58 = vst [vmem:[#allocation2 + $0x138] sm:$0xff] 0.0
    %59 = vst [vmem:[#allocation2 + $0x140] sm:$0xff] 0.0
    %60 = vst [vmem:[#allocation2 + $0x148] sm:$0xff] 0.0
    %61 = vst [vmem:[#allocation2 + $0x150] sm:$0xff] 0.0
    %62 = vst [vmem:[#allocation2 + $0x158] sm:$0xff] 0.0
    %63 = vst [vmem:[#allocation2 + $0x160] sm:$0xff] 0.0
    %64 = vst [vmem:[#allocation2 + $0x168] sm:$0xff] 0.0
    %65 = vst [vmem:[#allocation2 + $0x170] sm:$0xff] 0.0
    %66 = vst [vmem:[#allocation2 + $0x178] sm:$0xff] 0.0
    %67 = vst [vmem:[#allocation2 + $0x180] sm:$0xff] 0.0
    %68 = vst [vmem:[#allocation2 + $0x188] sm:$0xff] 0.0
    %69 = vst [vmem:[#allocation2 + $0x190] sm:$0xff] 0.0
    %70 = vst [vmem:[#allocation2 + $0x198] sm:$0xff] 0.0
    %71 = vst [vmem:[#allocation2 + $0x1a0] sm:$0xff] 0.0
    %72 = vst [vmem:[#allocation2 + $0x1a8] sm:$0xff] 0.0
    %73 = vst [vmem:[#allocation2 + $0x1b0] sm:$0xff] 0.0
    %74 = vst [vmem:[#allocation2 + $0x1b8] sm:$0xff] 0.0
    %75 = vst [vmem:[#allocation2 + $0x1c0] sm:$0xff] 0.0
    %76 = vst [vmem:[#allocation2 + $0x1c8] sm:$0xff] 0.0
    %77 = vst [vmem:[#allocation2 + $0x1d0] sm:$0xff] 0.0
    %78 = vst [vmem:[#allocation2 + $0x1d8] sm:$0xff] 0.0
    %79 = vst [vmem:[#allocation2 + $0x1e0] sm:$0xff] 0.0
    %80 = vst [vmem:[#allocation2 + $0x1e8] sm:$0xff] 0.0
    %81 = vst [vmem:[#allocation2 + $0x1f0] sm:$0xff] 0.0
    %82 = vst [vmem:[#allocation2 + $0x1f8] sm:$0xff] 0.0
  $region17: #{encoder_block_forward.3} parent=0 // pred_fallthru
    _
  %v83 = vld [vmem:[#allocation2] sm:$0xff]
  %v84 = vld [vmem:[#allocation2 + $0x8] sm:$0xff]
  %v85 = vld [vmem:[#allocation2 + $0x10] sm:$0xff]
  %v86 = vld [vmem:[#allocation2 + $0x18] sm:$0xff]
  %v87 = vld [vmem:[#allocation2 + $0x20] sm:$0xff]
  %v88 = vld [vmem:[#allocation2 + $0x28] sm:$0xff]
  %v89 = vld [vmem:[#allocation2 + $0x30] sm:$0xff]
  %v90 = vld [vmem:[#allocation2 + $0x38] sm:$0xff]
  %v91 = vld [vmem:[#allocation2 + $0x40] sm:$0xff]
  %v92 = vld [vmem:[#allocation2 + $0x48] sm:$0xff]
  %v93 = vld [vmem:[#allocation2 + $0x50] sm:$0xff]
  %v94 = vld [vmem:[#allocation2 + $0x58] sm:$0xff]
  %v95 = vld [vmem:[#allocation2 + $0x60] sm:$0xff]
  %v96 = vld [vmem:[#allocation2 + $0x68] sm:$0xff]
  %v97 = vld [vmem:[#allocation2 + $0x70] sm:$0xff]
  %v98 = vld [vmem:[#allocation2 + $0x78] sm:$0xff]
  %v99 = vld [vmem:[#allocation2 + $0x80] sm:$0xff]
  %v100 = vld [vmem:[#allocation2 + $0x88] sm:$0xff]
  %v101 = vld [vmem:[#allocation2 + $0x90] sm:$0xff]
  %v102 = vld [vmem:[#allocation2 + $0x98] sm:$0xff]
  %v103 = vld [vmem:[#allocation2 + $0xa0] sm:$0xff]
  %v104 = vld [vmem:[#allocation2 + $0xa8] sm:$0xff]
  %v105 = vld [vmem:[#allocation2 + $0xb0] sm:$0xff]
  %v106 = vld [vmem:[#allocation2 + $0xb8] sm:$0xff]
  %v107 = vld [vmem:[#allocation2 + $0xc0] sm:$0xff]
  %v108 = vld [vmem:[#allocation2 + $0xc8] sm:$0xff]
  %v109 = vld [vmem:[#allocation2 + $0xd0] sm:$0xff]
  %v110 = vld [vmem:[#allocation2 + $0xd8] sm:$0xff]
  %v111 = vld [vmem:[#allocation2 + $0xe0] sm:$0xff]
  %v112 = vld [vmem:[#allocation2 + $0xe8] sm:$0xff]
  %v113 = vld [vmem:[#allocation2 + $0xf0] sm:$0xff]
  %v114 = vld [vmem:[#allocation2 + $0xf8] sm:$0xff]
  %v115 = vld [vmem:[#allocation2 + $0x100] sm:$0xff]
  %v116 = vld [vmem:[#allocation2 + $0x108] sm:$0xff]
  %v117 = vld [vmem:[#allocation2 + $0x110] sm:$0xff]
  %v118 = vld [vmem:[#allocation2 + $0x118] sm:$0xff]
  %v119 = vld [vmem:[#allocation2 + $0x120] sm:$0xff]
  %v120 = vld [vmem:[#allocation2 + $0x128] sm:$0xff]
  %v121 = vld [vmem:[#allocation2 + $0x130] sm:$0xff]
  %v122 = vld [vmem:[#allocation2 + $0x138] sm:$0xff]
  %v123 = vld [vmem:[#allocation2 + $0x140] sm:$0xff]
  %v124 = vld [vmem:[#allocation2 + $0x148] sm:$0xff]
  %v125 = vld [vmem:[#allocation2 + $0x150] sm:$0xff]
  %v126 = vld [vmem:[#allocation2 + $0x158] sm:$0xff]
  %v127 = vld [vmem:[#allocation2 + $0x160] sm:$0xff]
  %v128 = vld [vmem:[#allocation2 + $0x168] sm:$0xff]
  %v129 = vld [vmem:[#allocation2 + $0x170] sm:$0xff]
  %v130 = vld [vmem:[#allocation2 + $0x178] sm:$0xff]
  %v131 = vld [vmem:[#allocation2 + $0x180] sm:$0xff]
  %v132 = vld [vmem:[#allocation2 + $0x188] sm:$0xff]
  %v133 = vld [vmem:[#allocation2 + $0x190] sm:$0xff]
  %v134 = vld [vmem:[#allocation2 + $0x198] sm:$0xff]
  %v135 = vld [vmem:[#allocation2 + $0x1a0] sm:$0xff]
  %v136 = vld [vmem:[#allocation2 + $0x1a8] sm:$0xff]
  %v137 = vld [vmem:[#allocation2 + $0x1b0] sm:$0xff]
  %v138 = vld [vmem:[#allocation2 + $0x1b8] sm:$0xff]
  %v139 = vld [vmem:[#allocation2 + $0x1c0] sm:$0xff]
  %v140 = vld [vmem:[#allocation2 + $0x1c8] sm:$0xff]
  %v141 = vld [vmem:[#allocation2 + $0x1d0] sm:$0xff]
  %v142 = vld [vmem:[#allocation2 + $0x1d8] sm:$0xff]
  %v143 = vld [vmem:[#allocation2 + $0x1e0] sm:$0xff]
  %v144 = vld [vmem:[#allocation2 + $0x1e8] sm:$0xff]
  %v145 = vld [vmem:[#allocation2 + $0x1f0] sm:$0xff]
  %v146 = vld [vmem:[#allocation2 + $0x1f8] sm:$0xff]
  %v147 = vld [vmem:[%s0] sm:$0xf]
  %v148 = vld [vmem:[%s0 + $0x4] sm:$0xf]
  %v149 = vld [vmem:[%s0 + $0x8] sm:$0xf]
  %v150 = vld [vmem:[%s0 + $0xc] sm:$0xf]
  %v151 = vld [vmem:[%s0 + $0x10] sm:$0xf]
  %v152 = vld [vmem:[%s0 + $0x14] sm:$0xf]
  %v153 = vld [vmem:[%s0 + $0x18] sm:$0xf]
  %v154 = vld [vmem:[%s0 + $0x1c] sm:$0xf]
  %v155 = vld [vmem:[%s0 + $0x20] sm:$0xf]
  %v156 = vld [vmem:[%s0 + $0x24] sm:$0xf]
  %v157 = vld [vmem:[%s0 + $0x28] sm:$0xf]
  %v158 = vld [vmem:[%s0 + $0x2c] sm:$0xf]
  %v159 = vld [vmem:[%s0 + $0x30] sm:$0xf]
  %v160 = vld [vmem:[%s0 + $0x34] sm:$0xf]
  %v161 = vld [vmem:[%s0 + $0x38] sm:$0xf]
  %v162 = vld [vmem:[%s0 + $0x3c] sm:$0xf]
  %v163 = vld [vmem:[%s0 + $0x40] sm:$0xf]
  %v164 = vld [vmem:[%s0 + $0x44] sm:$0xf]
  %v165 = vld [vmem:[%s0 + $0x48] sm:$0xf]
  %v166 = vld [vmem:[%s0 + $0x4c] sm:$0xf]
  %v167 = vld [vmem:[%s0 + $0x50] sm:$0xf]
  %v168 = vld [vmem:[%s0 + $0x54] sm:$0xf]
  %v169 = vld [vmem:[%s0 + $0x58] sm:$0xf]
  %v170 = vld [vmem:[%s0 + $0x5c] sm:$0xf]
  %v171 = vld [vmem:[%s0 + $0x60] sm:$0xf]
  %v172 = vld [vmem:[%s0 + $0x64] sm:$0xf]
  %v173 = vld [vmem:[%s0 + $0x68] sm:$0xf]
  %v174 = vld [vmem:[%s0 + $0x6c] sm:$0xf]
  %v175 = vld [vmem:[%s0 + $0x70] sm:$0xf]
  %v176 = vld [vmem:[%s0 + $0x74] sm:$0xf]
  %v177 = vld [vmem:[%s0 + $0x78] sm:$0xf]
  %v178 = vld [vmem:[%s0 + $0x7c] sm:$0xf]
  %v179 = vld [vmem:[%s0 + $0x80] sm:$0xf]
  %v180 = vld [vmem:[%s0 + $0x84] sm:$0xf]
  %v181 = vld [vmem:[%s0 + $0x88] sm:$0xf]
  %v182 = vld [vmem:[%s0 + $0x8c] sm:$0xf]
  %v183 = vld [vmem:[%s0 + $0x90] sm:$0xf]
  %v184 = vld [vmem:[%s0 + $0x94] sm:$0xf]
  %v185 = vld [vmem:[%s0 + $0x98] sm:$0xf]
  %v186 = vld [vmem:[%s0 + $0x9c] sm:$0xf]
  %v187 = vld [vmem:[%s0 + $0xa0] sm:$0xf]
  %v188 = vld [vmem:[%s0 + $0xa4] sm:$0xf]
  %v189 = vld [vmem:[%s0 + $0xa8] sm:$0xf]
  %v190 = vld [vmem:[%s0 + $0xac] sm:$0xf]
  %v191 = vld [vmem:[%s0 + $0xb0] sm:$0xf]
  %v192 = vld [vmem:[%s0 + $0xb4] sm:$0xf]
  %v193 = vld [vmem:[%s0 + $0xb8] sm:$0xf]
  %v194 = vld [vmem:[%s0 + $0xbc] sm:$0xf]
  %v195 = vld [vmem:[%s0 + $0xc0] sm:$0xf]
  %v196 = vld [vmem:[%s0 + $0xc4] sm:$0xf]
  %v197 = vld [vmem:[%s0 + $0xc8] sm:$0xf]
  %v198 = vld [vmem:[%s0 + $0xcc] sm:$0xf]
  %v199 = vld [vmem:[%s0 + $0xd0] sm:$0xf]
  %v200 = vld [vmem:[%s0 + $0xd4] sm:$0xf]
  %v201 = vld [vmem:[%s0 + $0xd8] sm:$0xf]
  %v202 = vld [vmem:[%s0 + $0xdc] sm:$0xf]
  %v203 = vld [vmem:[%s0 + $0xe0] sm:$0xf]
  %v204 = vld [vmem:[%s0 + $0xe4] sm:$0xf]
  %v205 = vld [vmem:[%s0 + $0xe8] sm:$0xf]
  %v206 = vld [vmem:[%s0 + $0xec] sm:$0xf]
  %v207 = vld [vmem:[%s0 + $0xf0] sm:$0xf]
  %v208 = vld [vmem:[%s0 + $0xf4] sm:$0xf]
  %v209 = vld [vmem:[%s0 + $0xf8] sm:$0xf]
  %v210 = vld [vmem:[%s0 + $0xfc] sm:$0xf]
  %v211 = vld [vmem:[%s1] sm:$0xf]
  %v212 = vld [vmem:[%s1 + $0x4] sm:$0xf]
  %v213 = vld [vmem:[%s1 + $0x8] sm:$0xf]
  %v214 = vld [vmem:[%s1 + $0xc] sm:$0xf]
  %v215 = vld [vmem:[%s1 + $0x10] sm:$0xf]
  %v216 = vld [vmem:[%s1 + $0x14] sm:$0xf]
  %v217 = vld [vmem:[%s1 + $0x18] sm:$0xf]
  %v218 = vld [vmem:[%s1 + $0x1c] sm:$0xf]
  %v219 = vld [vmem:[%s1 + $0x20] sm:$0xf]
  %v220 = vld [vmem:[%s1 + $0x24] sm:$0xf]
  %v221 = vld [vmem:[%s1 + $0x28] sm:$0xf]
  %v222 = vld [vmem:[%s1 + $0x2c] sm:$0xf]
  %v223 = vld [vmem:[%s1 + $0x30] sm:$0xf]
  %v224 = vld [vmem:[%s1 + $0x34] sm:$0xf]
  %v225 = vld [vmem:[%s1 + $0x38] sm:$0xf]
  %v226 = vld [vmem:[%s1 + $0x3c] sm:$0xf]
  %v291 = vunpack.c.l.b16 %v147
  %v292 = vunpack.c.l.b16 %v148
  %v293 = vunpack.c.l.b16 %v149
  %v294 = vunpack.c.l.b16 %v150
  %v295 = vunpack.c.l.b16 %v151
  %v296 = vunpack.c.l.b16 %v152
  %v297 = vunpack.c.l.b16 %v153
  %v298 = vunpack.c.l.b16 %v154
  %v299 = vunpack.c.l.b16 %v155
  %v300 = vunpack.c.l.b16 %v156
  %v301 = vunpack.c.l.b16 %v157
  %v302 = vunpack.c.l.b16 %v158
  %v303 = vunpack.c.l.b16 %v159
  %v304 = vunpack.c.l.b16 %v160
  %v305 = vunpack.c.l.b16 %v161
  %v306 = vunpack.c.l.b16 %v162
  %v307 = vunpack.c.l.b16 %v163
  %v308 = vunpack.c.l.b16 %v164
  %v309 = vunpack.c.l.b16 %v165
  %v310 = vunpack.c.l.b16 %v166
  %v311 = vunpack.c.l.b16 %v167
  %v312 = vunpack.c.l.b16 %v168
  %v313 = vunpack.c.l.b16 %v169
  %v314 = vunpack.c.l.b16 %v170
  %v315 = vunpack.c.l.b16 %v171
  %v316 = vunpack.c.l.b16 %v172
  %v317 = vunpack.c.l.b16 %v173
  %v318 = vunpack.c.l.b16 %v174
  %v319 = vunpack.c.l.b16 %v175
  %v320 = vunpack.c.l.b16 %v176
  %v321 = vunpack.c.l.b16 %v177
  %v322 = vunpack.c.l.b16 %v178
  %v323 = vunpack.c.l.b16 %v179
  %v324 = vunpack.c.l.b16 %v180
  %v325 = vunpack.c.l.b16 %v181
  %v326 = vunpack.c.l.b16 %v182
  %v327 = vunpack.c.l.b16 %v183
  %v328 = vunpack.c.l.b16 %v184
  %v329 = vunpack.c.l.b16 %v185
  %v330 = vunpack.c.l.b16 %v186
  %v331 = vunpack.c.l.b16 %v187
  %v332 = vunpack.c.l.b16 %v188
  %v333 = vunpack.c.l.b16 %v189
  %v334 = vunpack.c.l.b16 %v190
  %v335 = vunpack.c.l.b16 %v191
  %v336 = vunpack.c.l.b16 %v192
  %v337 = vunpack.c.l.b16 %v193
  %v338 = vunpack.c.l.b16 %v194
  %v339 = vunpack.c.l.b16 %v195
  %v340 = vunpack.c.l.b16 %v196
  %v341 = vunpack.c.l.b16 %v197
  %v342 = vunpack.c.l.b16 %v198
  %v343 = vunpack.c.l.b16 %v199
  %v344 = vunpack.c.l.b16 %v200
  %v345 = vunpack.c.l.b16 %v201
  %v346 = vunpack.c.l.b16 %v202
  %v347 = vunpack.c.l.b16 %v203
  %v348 = vunpack.c.l.b16 %v204
  %v349 = vunpack.c.l.b16 %v205
  %v350 = vunpack.c.l.b16 %v206
  %v351 = vunpack.c.l.b16 %v207
  %v352 = vunpack.c.l.b16 %v208
  %v353 = vunpack.c.l.b16 %v209
  %v354 = vunpack.c.l.b16 %v210
  %v355 = vpack.c.b16 %v292, %v291
  %v356 = vpack.c.b16 %v294, %v293
  %v357 = vpack.c.b16 %v296, %v295
  %v358 = vpack.c.b16 %v298, %v297
  %v359 = vpack.c.b16 %v300, %v299
  %v360 = vpack.c.b16 %v302, %v301
  %v361 = vpack.c.b16 %v304, %v303
  %v362 = vpack.c.b16 %v306, %v305
  %v363 = vpack.c.b16 %v308, %v307
  %v364 = vpack.c.b16 %v310, %v309
  %v365 = vpack.c.b16 %v312, %v311
  %v366 = vpack.c.b16 %v314, %v313
  %v367 = vpack.c.b16 %v316, %v315
  %v368 = vpack.c.b16 %v318, %v317
  %v369 = vpack.c.b16 %v320, %v319
  %v370 = vpack.c.b16 %v322, %v321
  %v371 = vpack.c.b16 %v324, %v323
  %v372 = vpack.c.b16 %v326, %v325
  %v373 = vpack.c.b16 %v328, %v327
  %v374 = vpack.c.b16 %v330, %v329
  %v375 = vpack.c.b16 %v332, %v331
  %v376 = vpack.c.b16 %v334, %v333
  %v377 = vpack.c.b16 %v336, %v335
  %v378 = vpack.c.b16 %v338, %v337
  %v379 = vpack.c.b16 %v340, %v339
  %v380 = vpack.c.b16 %v342, %v341
  %v381 = vpack.c.b16 %v344, %v343
  %v382 = vpack.c.b16 %v346, %v345
  %v383 = vpack.c.b16 %v348, %v347
  %v384 = vpack.c.b16 %v350, %v349
  %v385 = vpack.c.b16 %v352, %v351
  %v386 = vpack.c.b16 %v354, %v353
  %v435 = vunpack.c.l.b16 %v211
  %v436 = vunpack.c.l.b16 %v212
  %v437 = vunpack.c.l.b16 %v213
  %v438 = vunpack.c.l.b16 %v214
  %v439 = vunpack.c.l.b16 %v215
  %v440 = vunpack.c.l.b16 %v216
  %v441 = vunpack.c.l.b16 %v217
  %v442 = vunpack.c.l.b16 %v218
  %v443 = vunpack.c.l.b16 %v219
  %v444 = vunpack.c.l.b16 %v220
  %v445 = vunpack.c.l.b16 %v221
  %v446 = vunpack.c.l.b16 %v222
  %v447 = vunpack.c.l.b16 %v223
  %v448 = vunpack.c.l.b16 %v224
  %v449 = vunpack.c.l.b16 %v225
  %v450 = vunpack.c.l.b16 %v226
  %v451 = vpack.c.b16 %v436, %v435
  %v452 = vpack.c.b16 %v438, %v437
  %v453 = vpack.c.b16 %v440, %v439
  %v454 = vpack.c.b16 %v442, %v441
  %v455 = vpack.c.b16 %v444, %v443
  %v456 = vpack.c.b16 %v446, %v445
  %v457 = vpack.c.b16 %v448, %v447
  %v458 = vpack.c.b16 %v450, %v449
  %467 = vmatprep.subr.bf16.mxu0 0
  %468 = vmatpush1.bf16.msra.mxu0 %v458
  %469 = vmatprep.subr.bf16.mxu0 0
  %470 = vmatpush1.bf16.msra.mxu0 %v457
  %471 = vmatprep.subr.bf16.mxu0 0
  %472 = vmatpush1.bf16.msra.mxu0 %v456
  %473 = vmatprep.subr.bf16.mxu0 0
  %474 = vmatpush1.bf16.msra.mxu0 %v455
  %475 = vmatprep.subr.bf16.mxu0 0
  %476 = vmatpush1.bf16.msra.mxu0 %v454
  %477 = vmatprep.subr.bf16.mxu0 0
  %478 = vmatpush1.bf16.msra.mxu0 %v453
  %479 = vmatprep.subr.bf16.mxu0 0
  %480 = vmatpush1.bf16.msra.mxu0 %v452
  %481 = vmatprep.subr.bf16.mxu0 0
  %482 = vmatpush1.bf16.msra.mxu0 %v451
  %483 = vmatprep.subr.bf16.mxu0 0
  %484 = vmatpush2.bf16.msra.mxu0 0
  %485 = vmatprep.subr.bf16.mxu0 0
  %486 = vmatpush2.bf16.msra.mxu0 0
  %487 = vmatprep.subr.bf16.mxu0 0
  %488 = vmatpush2.bf16.msra.mxu0 0
  %489 = vmatprep.subr.bf16.mxu0 0
  %490 = vmatpush2.bf16.msra.mxu0 0
  %491 = vmatprep.subr.bf16.mxu0 0
  %492 = vmatpush2.bf16.msra.mxu0 0
  %493 = vmatprep.subr.bf16.mxu0 0
  %494 = vmatpush2.bf16.msra.mxu0 0
  %495 = vmatprep.subr.bf16.mxu0 0
  %496 = vmatpush2.bf16.msra.mxu0 0
  %497 = vmatprep.subr.bf16.mxu0 0
  %498 = vmatpush2.bf16.msra.mxu0 0
  %499 = vmatprep.mubr.bf16.mxu0 0
  %500 = vmatmul.mubr.bf16.gmra.mxu0 %v355
  %v501 = vpop.f32.mrf.mxu0
  %v502 = vadd.f32 0.0, %v501
  %v503 = vpop.f32.mrf.mxu0
  %v504 = vpop.f32.mrf.mxu0
  %v505 = vadd.f32 0.0, %v504
  %v506 = vpop.f32.mrf.mxu0
  %507 = vmatprep.mubr.bf16.mxu0 0
  %508 = vmatmul.mubr.bf16.gmra.mxu0 %v356
  %v509 = vpop.f32.mrf.mxu0
  %v510 = vadd.f32 0.0, %v509
  %v511 = vpop.f32.mrf.mxu0
  %v512 = vpop.f32.mrf.mxu0
  %v513 = vadd.f32 0.0, %v512
  %v514 = vpop.f32.mrf.mxu0
  %515 = vmatprep.mubr.bf16.mxu0 0
  %516 = vmatmul.mubr.bf16.gmra.mxu0 %v357
  %v517 = vpop.f32.mrf.mxu0
  %v518 = vadd.f32 0.0, %v517
  %v519 = vpop.f32.mrf.mxu0
  %v520 = vpop.f32.mrf.mxu0
  %v521 = vadd.f32 0.0, %v520
  %v522 = vpop.f32.mrf.mxu0
  %523 = vmatprep.mubr.bf16.mxu0 0
  %524 = vmatmul.mubr.bf16.gmra.mxu0 %v358
  %v525 = vpop.f32.mrf.mxu0
  %v526 = vadd.f32 0.0, %v525
  %v527 = vpop.f32.mrf.mxu0
  %v528 = vpop.f32.mrf.mxu0
  %v529 = vadd.f32 0.0, %v528
  %v530 = vpop.f32.mrf.mxu0
  %531 = vmatprep.mubr.bf16.mxu0 0
  %532 = vmatmul.mubr.bf16.gmra.mxu0 %v359
  %v533 = vpop.f32.mrf.mxu0
  %v534 = vadd.f32 0.0, %v533
  %v535 = vpop.f32.mrf.mxu0
  %v536 = vpop.f32.mrf.mxu0
  %v537 = vadd.f32 0.0, %v536
  %v538 = vpop.f32.mrf.mxu0
  %539 = vmatprep.mubr.bf16.mxu0 0
  %540 = vmatmul.mubr.bf16.gmra.mxu0 %v360
  %v541 = vpop.f32.mrf.mxu0
  %v542 = vadd.f32 0.0, %v541
  %v543 = vpop.f32.mrf.mxu0
  %v544 = vpop.f32.mrf.mxu0
  %v545 = vadd.f32 0.0, %v544
  %v546 = vpop.f32.mrf.mxu0
  %547 = vmatprep.mubr.bf16.mxu0 0
  %548 = vmatmul.mubr.bf16.gmra.mxu0 %v361
  %v549 = vpop.f32.mrf.mxu0
  %v550 = vadd.f32 0.0, %v549
  %v551 = vpop.f32.mrf.mxu0
  %v552 = vpop.f32.mrf.mxu0
  %v553 = vadd.f32 0.0, %v552
  %v554 = vpop.f32.mrf.mxu0
  %555 = vmatprep.mubr.bf16.mxu0 0
  %556 = vmatmul.mubr.bf16.gmra.mxu0 %v362
  %v557 = vpop.f32.mrf.mxu0
  %v558 = vadd.f32 0.0, %v557
  %v559 = vpop.f32.mrf.mxu0
  %v560 = vpop.f32.mrf.mxu0
  %v561 = vadd.f32 0.0, %v560
  %v562 = vpop.f32.mrf.mxu0
  %563 = vmatprep.mubr.bf16.mxu0 0
  %564 = vmatmul.mubr.bf16.gmra.mxu0 %v363
  %v565 = vpop.f32.mrf.mxu0
  %v566 = vadd.f32 0.0, %v565
  %v567 = vpop.f32.mrf.mxu0
  %v568 = vpop.f32.mrf.mxu0
  %v569 = vadd.f32 0.0, %v568
  %v570 = vpop.f32.mrf.mxu0
  %571 = vmatprep.mubr.bf16.mxu0 0
  %572 = vmatmul.mubr.bf16.gmra.mxu0 %v364
  %v573 = vpop.f32.mrf.mxu0
  %v574 = vadd.f32 0.0, %v573
  %v575 = vpop.f32.mrf.mxu0
  %v576 = vpop.f32.mrf.mxu0
  %v577 = vadd.f32 0.0, %v576
  %v578 = vpop.f32.mrf.mxu0
  %579 = vmatprep.mubr.bf16.mxu0 0
  %580 = vmatmul.mubr.bf16.gmra.mxu0 %v365
  %v581 = vpop.f32.mrf.mxu0
  %v582 = vadd.f32 0.0, %v581
  %v583 = vpop.f32.mrf.mxu0
  %v584 = vpop.f32.mrf.mxu0
  %v585 = vadd.f32 0.0, %v584
  %v586 = vpop.f32.mrf.mxu0
  %587 = vmatprep.mubr.bf16.mxu0 0
  %588 = vmatmul.mubr.bf16.gmra.mxu0 %v366
  %v589 = vpop.f32.mrf.mxu0
  %v590 = vadd.f32 0.0, %v589
  %v591 = vpop.f32.mrf.mxu0
  %v592 = vpop.f32.mrf.mxu0
  %v593 = vadd.f32 0.0, %v592
  %v594 = vpop.f32.mrf.mxu0
  %595 = vmatprep.mubr.bf16.mxu0 0
  %596 = vmatmul.mubr.bf16.gmra.mxu0 %v367
  %v597 = vpop.f32.mrf.mxu0
  %v598 = vadd.f32 0.0, %v597
  %v599 = vpop.f32.mrf.mxu0
  %v600 = vpop.f32.mrf.mxu0
  %v601 = vadd.f32 0.0, %v600
  %v602 = vpop.f32.mrf.mxu0
  %603 = vmatprep.mubr.bf16.mxu0 0
  %604 = vmatmul.mubr.bf16.gmra.mxu0 %v368
  %v605 = vpop.f32.mrf.mxu0
  %v606 = vadd.f32 0.0, %v605
  %v607 = vpop.f32.mrf.mxu0
  %v608 = vpop.f32.mrf.mxu0
  %v609 = vadd.f32 0.0, %v608
  %v610 = vpop.f32.mrf.mxu0
  %611 = vmatprep.mubr.bf16.mxu0 0
  %612 = vmatmul.mubr.bf16.gmra.mxu0 %v369
  %v613 = vpop.f32.mrf.mxu0
  %v614 = vadd.f32 0.0, %v613
  %v615 = vpop.f32.mrf.mxu0
  %v616 = vpop.f32.mrf.mxu0
  %v617 = vadd.f32 0.0, %v616
  %v618 = vpop.f32.mrf.mxu0
  %619 = vmatprep.mubr.bf16.mxu0 0
  %620 = vmatmul.mubr.bf16.gmra.mxu0 %v370
  %v621 = vpop.f32.mrf.mxu0
  %v622 = vadd.f32 0.0, %v621
  %v623 = vpop.f32.mrf.mxu0
  %v624 = vpop.f32.mrf.mxu0
  %v625 = vadd.f32 0.0, %v624
  %v626 = vpop.f32.mrf.mxu0
  %627 = vmatprep.mubr.bf16.mxu0 0
  %628 = vmatmul.mubr.bf16.gmra.mxu0 %v371
  %v629 = vpop.f32.mrf.mxu0
  %v630 = vadd.f32 0.0, %v629
  %v631 = vpop.f32.mrf.mxu0
  %v632 = vpop.f32.mrf.mxu0
  %v633 = vadd.f32 0.0, %v632
  %v634 = vpop.f32.mrf.mxu0
  %635 = vmatprep.mubr.bf16.mxu0 0
  %636 = vmatmul.mubr.bf16.gmra.mxu0 %v372
  %v637 = vpop.f32.mrf.mxu0
  %v638 = vadd.f32 0.0, %v637
  %v639 = vpop.f32.mrf.mxu0
  %v640 = vpop.f32.mrf.mxu0
  %v641 = vadd.f32 0.0, %v640
  %v642 = vpop.f32.mrf.mxu0
  %643 = vmatprep.mubr.bf16.mxu0 0
  %644 = vmatmul.mubr.bf16.gmra.mxu0 %v373
  %v645 = vpop.f32.mrf.mxu0
  %v646 = vadd.f32 0.0, %v645
  %v647 = vpop.f32.mrf.mxu0
  %v648 = vpop.f32.mrf.mxu0
  %v649 = vadd.f32 0.0, %v648
  %v650 = vpop.f32.mrf.mxu0
  %651 = vmatprep.mubr.bf16.mxu0 0
  %652 = vmatmul.mubr.bf16.gmra.mxu0 %v374
  %v653 = vpop.f32.mrf.mxu0
  %v654 = vadd.f32 0.0, %v653
  %v655 = vpop.f32.mrf.mxu0
  %v656 = vpop.f32.mrf.mxu0
  %v657 = vadd.f32 0.0, %v656
  %v658 = vpop.f32.mrf.mxu0
  %659 = vmatprep.mubr.bf16.mxu0 0
  %660 = vmatmul.mubr.bf16.gmra.mxu0 %v375
  %v661 = vpop.f32.mrf.mxu0
  %v662 = vadd.f32 0.0, %v661
  %v663 = vpop.f32.mrf.mxu0
  %v664 = vpop.f32.mrf.mxu0
  %v665 = vadd.f32 0.0, %v664
  %v666 = vpop.f32.mrf.mxu0
  %667 = vmatprep.mubr.bf16.mxu0 0
  %668 = vmatmul.mubr.bf16.gmra.mxu0 %v376
  %v669 = vpop.f32.mrf.mxu0
  %v670 = vadd.f32 0.0, %v669
  %v671 = vpop.f32.mrf.mxu0
  %v672 = vpop.f32.mrf.mxu0
  %v673 = vadd.f32 0.0, %v672
  %v674 = vpop.f32.mrf.mxu0
  %675 = vmatprep.mubr.bf16.mxu0 0
  %676 = vmatmul.mubr.bf16.gmra.mxu0 %v377
  %v677 = vpop.f32.mrf.mxu0
  %v678 = vadd.f32 0.0, %v677
  %v679 = vpop.f32.mrf.mxu0
  %v680 = vpop.f32.mrf.mxu0
  %v681 = vadd.f32 0.0, %v680
  %v682 = vpop.f32.mrf.mxu0
  %683 = vmatprep.mubr.bf16.mxu0 0
  %684 = vmatmul.mubr.bf16.gmra.mxu0 %v378
  %v685 = vpop.f32.mrf.mxu0
  %v686 = vadd.f32 0.0, %v685
  %v687 = vpop.f32.mrf.mxu0
  %v688 = vpop.f32.mrf.mxu0
  %v689 = vadd.f32 0.0, %v688
  %v690 = vpop.f32.mrf.mxu0
  %691 = vmatprep.mubr.bf16.mxu0 0
  %692 = vmatmul.mubr.bf16.gmra.mxu0 %v379
  %v693 = vpop.f32.mrf.mxu0
  %v694 = vadd.f32 0.0, %v693
  %v695 = vpop.f32.mrf.mxu0
  %v696 = vpop.f32.mrf.mxu0
  %v697 = vadd.f32 0.0, %v696
  %v698 = vpop.f32.mrf.mxu0
  %699 = vmatprep.mubr.bf16.mxu0 0
  %700 = vmatmul.mubr.bf16.gmra.mxu0 %v380
  %v701 = vpop.f32.mrf.mxu0
  %v702 = vadd.f32 0.0, %v701
  %v703 = vpop.f32.mrf.mxu0
  %v704 = vpop.f32.mrf.mxu0
  %v705 = vadd.f32 0.0, %v704
  %v706 = vpop.f32.mrf.mxu0
  %707 = vmatprep.mubr.bf16.mxu0 0
  %708 = vmatmul.mubr.bf16.gmra.mxu0 %v381
  %v709 = vpop.f32.mrf.mxu0
  %v710 = vadd.f32 0.0, %v709
  %v711 = vpop.f32.mrf.mxu0
  %v712 = vpop.f32.mrf.mxu0
  %v713 = vadd.f32 0.0, %v712
  %v714 = vpop.f32.mrf.mxu0
  %715 = vmatprep.mubr.bf16.mxu0 0
  %716 = vmatmul.mubr.bf16.gmra.mxu0 %v382
  %v717 = vpop.f32.mrf.mxu0
  %v718 = vadd.f32 0.0, %v717
  %v719 = vpop.f32.mrf.mxu0
  %v720 = vpop.f32.mrf.mxu0
  %v721 = vadd.f32 0.0, %v720
  %v722 = vpop.f32.mrf.mxu0
  %723 = vmatprep.mubr.bf16.mxu0 0
  %724 = vmatmul.mubr.bf16.gmra.mxu0 %v383
  %v725 = vpop.f32.mrf.mxu0
  %v726 = vadd.f32 0.0, %v725
  %v727 = vpop.f32.mrf.mxu0
  %v728 = vpop.f32.mrf.mxu0
  %v729 = vadd.f32 0.0, %v728
  %v730 = vpop.f32.mrf.mxu0
  %731 = vmatprep.mubr.bf16.mxu0 0
  %732 = vmatmul.mubr.bf16.gmra.mxu0 %v384
  %v733 = vpop.f32.mrf.mxu0
  %v734 = vadd.f32 0.0, %v733
  %v735 = vpop.f32.mrf.mxu0
  %v736 = vpop.f32.mrf.mxu0
  %v737 = vadd.f32 0.0, %v736
  %v738 = vpop.f32.mrf.mxu0
  %739 = vmatprep.mubr.bf16.mxu0 0
  %740 = vmatmul.mubr.bf16.gmra.mxu0 %v385
  %v741 = vpop.f32.mrf.mxu0
  %v742 = vadd.f32 0.0, %v741
  %v743 = vpop.f32.mrf.mxu0
  %v744 = vpop.f32.mrf.mxu0
  %v745 = vadd.f32 0.0, %v744
  %v746 = vpop.f32.mrf.mxu0
  %747 = vmatprep.mubr.bf16.mxu0 0
  %748 = vmatmul.mubr.bf16.gmra.mxu0 %v386
  %v749 = vpop.f32.mrf.mxu0
  %v750 = vadd.f32 0.0, %v749
  %v751 = vpop.f32.mrf.mxu0
  %v752 = vpop.f32.mrf.mxu0
  %v753 = vadd.f32 0.0, %v752
  %v754 = vpop.f32.mrf.mxu0
  %755 = vdwg.mxu0
  %v756 = vadd.f32 %v83, %v502
  %v757 = vadd.f32 %v84, %v505
  %v758 = vadd.f32 %v85, %v510
  %v759 = vadd.f32 %v86, %v513
  %v760 = vadd.f32 %v87, %v518
  %v761 = vadd.f32 %v88, %v521
  %v762 = vadd.f32 %v89, %v526
  %v763 = vadd.f32 %v90, %v529
  %v764 = vadd.f32 %v91, %v534
  %v765 = vadd.f32 %v92, %v537
  %v766 = vadd.f32 %v93, %v542
  %v767 = vadd.f32 %v94, %v545
  %v768 = vadd.f32 %v95, %v550
  %v769 = vadd.f32 %v96, %v553
  %v770 = vadd.f32 %v97, %v558
  %v771 = vadd.f32 %v98, %v561
  %v772 = vadd.f32 %v99, %v566
  %v773 = vadd.f32 %v100, %v569
  %v774 = vadd.f32 %v101, %v574
  %v775 = vadd.f32 %v102, %v577
  %v776 = vadd.f32 %v103, %v582
  %v777 = vadd.f32 %v104, %v585
  %v778 = vadd.f32 %v105, %v590
  %v779 = vadd.f32 %v106, %v593
  %v780 = vadd.f32 %v107, %v598
  %v781 = vadd.f32 %v108, %v601
  %v782 = vadd.f32 %v109, %v606
  %v783 = vadd.f32 %v110, %v609
  %v784 = vadd.f32 %v111, %v614
  %v785 = vadd.f32 %v112, %v617
  %v786 = vadd.f32 %v113, %v622
  %v787 = vadd.f32 %v114, %v625
  %v788 = vadd.f32 %v115, %v630
  %v789 = vadd.f32 %v116, %v633
  %v790 = vadd.f32 %v117, %v638
  %v791 = vadd.f32 %v118, %v641
  %v792 = vadd.f32 %v119, %v646
  %v793 = vadd.f32 %v120, %v649
  %v794 = vadd.f32 %v121, %v654
  %v795 = vadd.f32 %v122, %v657
  %v796 = vadd.f32 %v123, %v662
  %v797 = vadd.f32 %v124, %v665
  %v798 = vadd.f32 %v125, %v670
  %v799 = vadd.f32 %v126, %v673
  %v800 = vadd.f32 %v127, %v678
  %v801 = vadd.f32 %v128, %v681
  %v802 = vadd.f32 %v129, %v686
  %v803 = vadd.f32 %v130, %v689
  %v804 = vadd.f32 %v131, %v694
  %v805 = vadd.f32 %v132, %v697
  %v806 = vadd.f32 %v133, %v702
  %v807 = vadd.f32 %v134, %v705
  %v808 = vadd.f32 %v135, %v710
  %v809 = vadd.f32 %v136, %v713
  %v810 = vadd.f32 %v137, %v718
  %v811 = vadd.f32 %v138, %v721
  %v812 = vadd.f32 %v139, %v726
  %v813 = vadd.f32 %v140, %v729
  %v814 = vadd.f32 %v141, %v734
  %v815 = vadd.f32 %v142, %v737
  %v816 = vadd.f32 %v143, %v742
  %v817 = vadd.f32 %v144, %v745
  %v818 = vadd.f32 %v145, %v750
  %v819 = vadd.f32 %v146, %v753
  %820 = vst [vmem:[#allocation2] sm:$0xff] %v756
  %821 = vst [vmem:[#allocation2 + $0x8] sm:$0xff] %v757
  %822 = vst [vmem:[#allocation2 + $0x10] sm:$0xff] %v758
  %823 = vst [vmem:[#allocation2 + $0x18] sm:$0xff] %v759
  %824 = vst [vmem:[#allocation2 + $0x20] sm:$0xff] %v760
  %825 = vst [vmem:[#allocation2 + $0x28] sm:$0xff] %v761
  %826 = vst [vmem:[#allocation2 + $0x30] sm:$0xff] %v762
  %827 = vst [vmem:[#allocation2 + $0x38] sm:$0xff] %v763
  %828 = vst [vmem:[#allocation2 + $0x40] sm:$0xff] %v764
  %829 = vst [vmem:[#allocation2 + $0x48] sm:$0xff] %v765
  %830 = vst [vmem:[#allocation2 + $0x50] sm:$0xff] %v766
  %831 = vst [vmem:[#allocation2 + $0x58] sm:$0xff] %v767
  %832 = vst [vmem:[#allocation2 + $0x60] sm:$0xff] %v768
  %833 = vst [vmem:[#allocation2 + $0x68] sm:$0xff] %v769
  %834 = vst [vmem:[#allocation2 + $0x70] sm:$0xff] %v770
  %835 = vst [vmem:[#allocation2 + $0x78] sm:$0xff] %v771
  %836 = vst [vmem:[#allocation2 + $0x80] sm:$0xff] %v772
  %837 = vst [vmem:[#allocation2 + $0x88] sm:$0xff] %v773
  %838 = vst [vmem:[#allocation2 + $0x90] sm:$0xff] %v774
  %839 = vst [vmem:[#allocation2 + $0x98] sm:$0xff] %v775
  %840 = vst [vmem:[#allocation2 + $0xa0] sm:$0xff] %v776
  %841 = vst [vmem:[#allocation2 + $0xa8] sm:$0xff] %v777
  %842 = vst [vmem:[#allocation2 + $0xb0] sm:$0xff] %v778
  %843 = vst [vmem:[#allocation2 + $0xb8] sm:$0xff] %v779
  %844 = vst [vmem:[#allocation2 + $0xc0] sm:$0xff] %v780
  %845 = vst [vmem:[#allocation2 + $0xc8] sm:$0xff] %v781
  %846 = vst [vmem:[#allocation2 + $0xd0] sm:$0xff] %v782
  %847 = vst [vmem:[#allocation2 + $0xd8] sm:$0xff] %v783
  %848 = vst [vmem:[#allocation2 + $0xe0] sm:$0xff] %v784
  %849 = vst [vmem:[#allocation2 + $0xe8] sm:$0xff] %v785
  %850 = vst [vmem:[#allocation2 + $0xf0] sm:$0xff] %v786
  %851 = vst [vmem:[#allocation2 + $0xf8] sm:$0xff] %v787
  %852 = vst [vmem:[#allocation2 + $0x100] sm:$0xff] %v788
  %853 = vst [vmem:[#allocation2 + $0x108] sm:$0xff] %v789
  %854 = vst [vmem:[#allocation2 + $0x110] sm:$0xff] %v790
  %855 = vst [vmem:[#allocation2 + $0x118] sm:$0xff] %v791
  %856 = vst [vmem:[#allocation2 + $0x120] sm:$0xff] %v792
  %857 = vst [vmem:[#allocation2 + $0x128] sm:$0xff] %v793
  %858 = vst [vmem:[#allocation2 + $0x130] sm:$0xff] %v794
  %859 = vst [vmem:[#allocation2 + $0x138] sm:$0xff] %v795
  %860 = vst [vmem:[#allocation2 + $0x140] sm:$0xff] %v796
  %861 = vst [vmem:[#allocation2 + $0x148] sm:$0xff] %v797
  %862 = vst [vmem:[#allocation2 + $0x150] sm:$0xff] %v798
  %863 = vst [vmem:[#allocation2 + $0x158] sm:$0xff] %v799
  %864 = vst [vmem:[#allocation2 + $0x160] sm:$0xff] %v800
  %865 = vst [vmem:[#allocation2 + $0x168] sm:$0xff] %v801
  %866 = vst [vmem:[#allocation2 + $0x170] sm:$0xff] %v802
  %867 = vst [vmem:[#allocation2 + $0x178] sm:$0xff] %v803
  %868 = vst [vmem:[#allocation2 + $0x180] sm:$0xff] %v804
  %869 = vst [vmem:[#allocation2 + $0x188] sm:$0xff] %v805
  %870 = vst [vmem:[#allocation2 + $0x190] sm:$0xff] %v806
  %871 = vst [vmem:[#allocation2 + $0x198] sm:$0xff] %v807
  %872 = vst [vmem:[#allocation2 + $0x1a0] sm:$0xff] %v808
  %873 = vst [vmem:[#allocation2 + $0x1a8] sm:$0xff] %v809
  %874 = vst [vmem:[#allocation2 + $0x1b0] sm:$0xff] %v810
  %875 = vst [vmem:[#allocation2 + $0x1b8] sm:$0xff] %v811
  %876 = vst [vmem:[#allocation2 + $0x1c0] sm:$0xff] %v812
  %877 = vst [vmem:[#allocation2 + $0x1c8] sm:$0xff] %v813
  %878 = vst [vmem:[#allocation2 + $0x1d0] sm:$0xff] %v814
  %879 = vst [vmem:[#allocation2 + $0x1d8] sm:$0xff] %v815
  %880 = vst [vmem:[#allocation2 + $0x1e0] sm:$0xff] %v816
  %881 = vst [vmem:[#allocation2 + $0x1e8] sm:$0xff] %v817
  %882 = vst [vmem:[#allocation2 + $0x1f0] sm:$0xff] %v818
  %883 = vst [vmem:[#allocation2 + $0x1f8] sm:$0xff] %v819
  // Predicated region
  $region18: #{encoder_block_forward.3} parent=0 // pred_check
    %p884 = pneg %p15
  $region19: #{encoder_block_forward.3} parent=0 // pred_check_branch
    %886 = sbr.rel (%p884) target = $region21
  $region20: #{encoder_block_forward.3} parent=0 // pred_region
    %v887 = vld [vmem:[#allocation2] sm:$0xff]
    %v888 = vld [vmem:[#allocation2 + $0x8] sm:$0xff]
    %v889 = vld [vmem:[#allocation2 + $0x10] sm:$0xff]
    %v890 = vld [vmem:[#allocation2 + $0x18] sm:$0xff]
    %v891 = vld [vmem:[#allocation2 + $0x20] sm:$0xff]
    %v892 = vld [vmem:[#allocation2 + $0x28] sm:$0xff]
    %v893 = vld [vmem:[#allocation2 + $0x30] sm:$0xff]
    %v894 = vld [vmem:[#allocation2 + $0x38] sm:$0xff]
    %v895 = vld [vmem:[#allocation2 + $0x40] sm:$0xff]
    %v896 = vld [vmem:[#allocation2 + $0x48] sm:$0xff]
    %v897 = vld [vmem:[#allocation2 + $0x50] sm:$0xff]
    %v898 = vld [vmem:[#allocation2 + $0x58] sm:$0xff]
    %v899 = vld [vmem:[#allocation2 + $0x60] sm:$0xff]
    %v900 = vld [vmem:[#allocation2 + $0x68] sm:$0xff]
    %v901 = vld [vmem:[#allocation2 + $0x70] sm:$0xff]
    %v902 = vld [vmem:[#allocation2 + $0x78] sm:$0xff]
    %v903 = vld [vmem:[#allocation2 + $0x80] sm:$0xff]
    %v904 = vld [vmem:[#allocation2 + $0x88] sm:$0xff]
    %v905 = vld [vmem:[#allocation2 + $0x90] sm:$0xff]
    %v906 = vld [vmem:[#allocation2 + $0x98] sm:$0xff]
    %v907 = vld [vmem:[#allocation2 + $0xa0] sm:$0xff]
    %v908 = vld [vmem:[#allocation2 + $0xa8] sm:$0xff]
    %v909 = vld [vmem:[#allocation2 + $0xb0] sm:$0xff]
    %v910 = vld [vmem:[#allocation2 + $0xb8] sm:$0xff]
    %v911 = vld [vmem:[#allocation2 + $0xc0] sm:$0xff]
    %v912 = vld [vmem:[#allocation2 + $0xc8] sm:$0xff]
    %v913 = vld [vmem:[#allocation2 + $0xd0] sm:$0xff]
    %v914 = vld [vmem:[#allocation2 + $0xd8] sm:$0xff]
    %v915 = vld [vmem:[#allocation2 + $0xe0] sm:$0xff]
    %v916 = vld [vmem:[#allocation2 + $0xe8] sm:$0xff]
    %v917 = vld [vmem:[#allocation2 + $0xf0] sm:$0xff]
    %v918 = vld [vmem:[#allocation2 + $0xf8] sm:$0xff]
    %v919 = vld [vmem:[#allocation2 + $0x100] sm:$0xff]
    %v920 = vld [vmem:[#allocation2 + $0x108] sm:$0xff]
    %v921 = vld [vmem:[#allocation2 + $0x110] sm:$0xff]
    %v922 = vld [vmem:[#allocation2 + $0x118] sm:$0xff]
    %v923 = vld [vmem:[#allocation2 + $0x120] sm:$0xff]
    %v924 = vld [vmem:[#allocation2 + $0x128] sm:$0xff]
    %v925 = vld [vmem:[#allocation2 + $0x130] sm:$0xff]
    %v926 = vld [vmem:[#allocation2 + $0x138] sm:$0xff]
    %v927 = vld [vmem:[#allocation2 + $0x140] sm:$0xff]
    %v928 = vld [vmem:[#allocation2 + $0x148] sm:$0xff]
    %v929 = vld [vmem:[#allocation2 + $0x150] sm:$0xff]
    %v930 = vld [vmem:[#allocation2 + $0x158] sm:$0xff]
    %v931 = vld [vmem:[#allocation2 + $0x160] sm:$0xff]
    %v932 = vld [vmem:[#allocation2 + $0x168] sm:$0xff]
    %v933 = vld [vmem:[#allocation2 + $0x170] sm:$0xff]
    %v934 = vld [vmem:[#allocation2 + $0x178] sm:$0xff]
    %v935 = vld [vmem:[#allocation2 + $0x180] sm:$0xff]
    %v936 = vld [vmem:[#allocation2 + $0x188] sm:$0xff]
    %v937 = vld [vmem:[#allocation2 + $0x190] sm:$0xff]
    %v938 = vld [vmem:[#allocation2 + $0x198] sm:$0xff]
    %v939 = vld [vmem:[#allocation2 + $0x1a0] sm:$0xff]
    %v940 = vld [vmem:[#allocation2 + $0x1a8] sm:$0xff]
    %v941 = vld [vmem:[#allocation2 + $0x1b0] sm:$0xff]
    %v942 = vld [vmem:[#allocation2 + $0x1b8] sm:$0xff]
    %v943 = vld [vmem:[#allocation2 + $0x1c0] sm:$0xff]
    %v944 = vld [vmem:[#allocation2 + $0x1c8] sm:$0xff]
    %v945 = vld [vmem:[#allocation2 + $0x1d0] sm:$0xff]
    %v946 = vld [vmem:[#allocation2 + $0x1d8] sm:$0xff]
    %v947 = vld [vmem:[#allocation2 + $0x1e0] sm:$0xff]
    %v948 = vld [vmem:[#allocation2 + $0x1e8] sm:$0xff]
    %v949 = vld [vmem:[#allocation2 + $0x1f0] sm:$0xff]
    %v950 = vld [vmem:[#allocation2 + $0x1f8] sm:$0xff]
    %v951 = vld [vmem:[%s2] sm:$0x1]
    %v953 = vlaneseq
    %v954 = vshrl.u32 %v953, 7
    %v955 = vsub.s32 0, %v954
    %v956 = vrot.slane %v951, %v955
    %v958 = vadd.f32 %v887, %v956
    %v959 = vadd.f32 %v888, %v956
    %v960 = vadd.f32 %v889, %v956
    %v961 = vadd.f32 %v890, %v956
    %v962 = vadd.f32 %v891, %v956
    %v963 = vadd.f32 %v892, %v956
    %v964 = vadd.f32 %v893, %v956
    %v965 = vadd.f32 %v894, %v956
    %v966 = vadd.f32 %v895, %v956
    %v967 = vadd.f32 %v896, %v956
    %v968 = vadd.f32 %v897, %v956
    %v969 = vadd.f32 %v898, %v956
    %v970 = vadd.f32 %v899, %v956
    %v971 = vadd.f32 %v900, %v956
    %v972 = vadd.f32 %v901, %v956
    %v973 = vadd.f32 %v902, %v956
    %v974 = vadd.f32 %v903, %v956
    %v975 = vadd.f32 %v904, %v956
    %v976 = vadd.f32 %v905, %v956
    %v977 = vadd.f32 %v906, %v956
    %v978 = vadd.f32 %v907, %v956
    %v979 = vadd.f32 %v908, %v956
    %v980 = vadd.f32 %v909, %v956
    %v981 = vadd.f32 %v910, %v956
    %v982 = vadd.f32 %v911, %v956
    %v983 = vadd.f32 %v912, %v956
    %v984 = vadd.f32 %v913, %v956
    %v985 = vadd.f32 %v914, %v956
    %v986 = vadd.f32 %v915, %v956
    %v987 = vadd.f32 %v916, %v956
    %v988 = vadd.f32 %v917, %v956
    %v989 = vadd.f32 %v918, %v956
    %v990 = vadd.f32 %v919, %v956
    %v991 = vadd.f32 %v920, %v956
    %v992 = vadd.f32 %v921, %v956
    %v993 = vadd.f32 %v922, %v956
    %v994 = vadd.f32 %v923, %v956
    %v995 = vadd.f32 %v924, %v956
    %v996 = vadd.f32 %v925, %v956
    %v997 = vadd.f32 %v926, %v956
    %v998 = vadd.f32 %v927, %v956
    %v999 = vadd.f32 %v928, %v956
    %v1000 = vadd.f32 %v929, %v956
    %v1001 = vadd.f32 %v930, %v956
    %v1002 = vadd.f32 %v931, %v956
    %v1003 = vadd.f32 %v932, %v956
    %v1004 = vadd.f32 %v933, %v956
    %v1005 = vadd.f32 %v934, %v956
    %v1006 = vadd.f32 %v935, %v956
    %v1007 = vadd.f32 %v936, %v956
    %v1008 = vadd.f32 %v937, %v956
    %v1009 = vadd.f32 %v938, %v956
    %v1010 = vadd.f32 %v939, %v956
    %v1011 = vadd.f32 %v940, %v956
    %v1012 = vadd.f32 %v941, %v956
    %v1013 = vadd.f32 %v942, %v956
    %v1014 = vadd.f32 %v943, %v956
    %v1015 = vadd.f32 %v944, %v956
    %v1016 = vadd.f32 %v945, %v956
    %v1017 = vadd.f32 %v946, %v956
    %v1018 = vadd.f32 %v947, %v956
    %v1019 = vadd.f32 %v948, %v956
    %v1020 = vadd.f32 %v949, %v956
    %v1021 = vadd.f32 %v950, %v956
    %1022 = vst [vmem:[%s3] sm:$0xff] %v958
    %1023 = vst [vmem:[%s3 + $0x8] sm:$0xff] %v959
    %1024 = vst [vmem:[%s3 + $0x10] sm:$0xff] %v960
    %1025 = vst [vmem:[%s3 + $0x18] sm:$0xff] %v961
    %1026 = vst [vmem:[%s3 + $0x20] sm:$0xff] %v962
    %1027 = vst [vmem:[%s3 + $0x28] sm:$0xff] %v963
    %1028 = vst [vmem:[%s3 + $0x30] sm:$0xff] %v964
    %1029 = vst [vmem:[%s3 + $0x38] sm:$0xff] %v965
    %1030 = vst [vmem:[%s3 + $0x40] sm:$0xff] %v966
    %1031 = vst [vmem:[%s3 + $0x48] sm:$0xff] %v967
    %1032 = vst [vmem:[%s3 + $0x50] sm:$0xff] %v968
    %1033 = vst [vmem:[%s3 + $0x58] sm:$0xff] %v969
    %1034 = vst [vmem:[%s3 + $0x60] sm:$0xff] %v970
    %1035 = vst [vmem:[%s3 + $0x68] sm:$0xff] %v971
    %1036 = vst [vmem:[%s3 + $0x70] sm:$0xff] %v972
    %1037 = vst [vmem:[%s3 + $0x78] sm:$0xff] %v973
    %1038 = vst [vmem:[%s3 + $0x80] sm:$0xff] %v974
    %1039 = vst [vmem:[%s3 + $0x88] sm:$0xff] %v975
    %1040 = vst [vmem:[%s3 + $0x90] sm:$0xff] %v976
    %1041 = vst [vmem:[%s3 + $0x98] sm:$0xff] %v977
    %1042 = vst [vmem:[%s3 + $0xa0] sm:$0xff] %v978
    %1043 = vst [vmem:[%s3 + $0xa8] sm:$0xff] %v979
    %1044 = vst [vmem:[%s3 + $0xb0] sm:$0xff] %v980
    %1045 = vst [vmem:[%s3 + $0xb8] sm:$0xff] %v981
    %1046 = vst [vmem:[%s3 + $0xc0] sm:$0xff] %v982
    %1047 = vst [vmem:[%s3 + $0xc8] sm:$0xff] %v983
    %1048 = vst [vmem:[%s3 + $0xd0] sm:$0xff] %v984
    %1049 = vst [vmem:[%s3 + $0xd8] sm:$0xff] %v985
    %1050 = vst [vmem:[%s3 + $0xe0] sm:$0xff] %v986
    %1051 = vst [vmem:[%s3 + $0xe8] sm:$0xff] %v987
    %1052 = vst [vmem:[%s3 + $0xf0] sm:$0xff] %v988
    %1053 = vst [vmem:[%s3 + $0xf8] sm:$0xff] %v989
    %1054 = vst [vmem:[%s3 + $0x100] sm:$0xff] %v990
    %1055 = vst [vmem:[%s3 + $0x108] sm:$0xff] %v991
    %1056 = vst [vmem:[%s3 + $0x110] sm:$0xff] %v992
    %1057 = vst [vmem:[%s3 + $0x118] sm:$0xff] %v993
    %1058 = vst [vmem:[%s3 + $0x120] sm:$0xff] %v994
    %1059 = vst [vmem:[%s3 + $0x128] sm:$0xff] %v995
    %1060 = vst [vmem:[%s3 + $0x130] sm:$0xff] %v996
    %1061 = vst [vmem:[%s3 + $0x138] sm:$0xff] %v997
    %1062 = vst [vmem:[%s3 + $0x140] sm:$0xff] %v998
    %1063 = vst [vmem:[%s3 + $0x148] sm:$0xff] %v999
    %1064 = vst [vmem:[%s3 + $0x150] sm:$0xff] %v1000
    %1065 = vst [vmem:[%s3 + $0x158] sm:$0xff] %v1001
    %1066 = vst [vmem:[%s3 + $0x160] sm:$0xff] %v1002
    %1067 = vst [vmem:[%s3 + $0x168] sm:$0xff] %v1003
    %1068 = vst [vmem:[%s3 + $0x170] sm:$0xff] %v1004
    %1069 = vst [vmem:[%s3 + $0x178] sm:$0xff] %v1005
    %1070 = vst [vmem:[%s3 + $0x180] sm:$0xff] %v1006
    %1071 = vst [vmem:[%s3 + $0x188] sm:$0xff] %v1007
    %1072 = vst [vmem:[%s3 + $0x190] sm:$0xff] %v1008
    %1073 = vst [vmem:[%s3 + $0x198] sm:$0xff] %v1009
    %1074 = vst [vmem:[%s3 + $0x1a0] sm:$0xff] %v1010
    %1075 = vst [vmem:[%s3 + $0x1a8] sm:$0xff] %v1011
    %1076 = vst [vmem:[%s3 + $0x1b0] sm:$0xff] %v1012
    %1077 = vst [vmem:[%s3 + $0x1b8] sm:$0xff] %v1013
    %1078 = vst [vmem:[%s3 + $0x1c0] sm:$0xff] %v1014
    %1079 = vst [vmem:[%s3 + $0x1c8] sm:$0xff] %v1015
    %1080 = vst [vmem:[%s3 + $0x1d0] sm:$0xff] %v1016
    %1081 = vst [vmem:[%s3 + $0x1d8] sm:$0xff] %v1017
    %1082 = vst [vmem:[%s3 + $0x1e0] sm:$0xff] %v1018
    %1083 = vst [vmem:[%s3 + $0x1e8] sm:$0xff] %v1019
    %1084 = vst [vmem:[%s3 + $0x1f0] sm:$0xff] %v1020
    %1085 = vst [vmem:[%s3 + $0x1f8] sm:$0xff] %v1021
  $region21: #{encoder_block_forward.3} parent=0 // pred_fallthru
    _
  // Predicated region
  $region22: #{encoder_block_forward.3} parent=0 // pred_check
    _
  $region23: #{encoder_block_forward.3} parent=0 // pred_check_branch
    %1087 = sbr.rel (0) target = $region25
  $region24: #{encoder_block_forward.3} parent=0 // pred_region
    _
  $region25: #{encoder_block_forward.3} parent=0 // pred_fallthru
    _
  // Predicated region
  $region26: #{encoder_block_forward.3} parent=0 // pred_check
    _
  $region27: #{encoder_block_forward.3} parent=0 // pred_check_branch
    %1089 = sbr.rel (0) target = $region29
  $region28: #{encoder_block_forward.3} parent=0 // pred_region
    _
  $region29: #{encoder_block_forward.3} parent=0 // pred_fallthru
    _

</llo_original>
